<compile_context>
chip_gen: v6e
topology: v6e:2x2x1
jax: 0.10.0
libtpu: 0.0.40
codegen_flags: <defaults>
</compile_context>

<pallas_src>
import jax
import jax.numpy as jnp
from jax.experimental import pallas as pl
from jax.experimental.pallas import tpu as pltpu


def _birnn_kernel(xp_ref, whh_ref, who_ref, bo_ref, out_ref, hf_ref, hb_ref):
    """Fused bidirectional RNN.

    xp_ref  : (T, B, 2H) fused x-projection; [:, :, :H]  = W_xh_f[tok_t] + b_h_f
                                             [:, :, H:]  = W_xh_b[tok_{T-1-t}] + b_h_b
    whh_ref : (2H, 2H)   block-diag [[W_hh_f, 0], [0, W_hh_b]]
    who_ref : (2H, V)    output projection (rows 0:H forward, H:2H backward)
    bo_ref  : (1, V)
    out_ref : (T, B, V)  per-timestep logits (reshaped to (T*B, V) on host)
    hf_ref  : (B, H)     final forward state  (after processing t = T-1)
    hb_ref  : (B, H)     final backward state (after processing t = 0)
    """
    T, B, H2 = xp_ref.shape
    H = H2 // 2

    whh = whh_ref[...]            # loaded once, stays in vregs
    w_f = who_ref[:H, :]          # static, sublane-aligned slices (H multiple of 8)
    w_b = who_ref[H:, :]
    bo = bo_ref[...]

    # Single fused recurrence: left half = forward(t), right half = backward
    # iteration t (which processes original time T-1-t). Static unroll.
    h = jnp.zeros((B, H2), jnp.float32)
    hs = []
    for t in range(T):
        h = jnp.tanh(xp_ref[t]
                     + jnp.dot(h, whh, preferred_element_type=jnp.float32))
        hs.append(h)

    # Output at original time t pairs forward(t) with the backward state that
    # processed original time t, i.e. fused-step index T-1-t.
    for t in range(T):
        out_ref[t] = (
            jnp.dot(hs[t][:, :H], w_f, preferred_element_type=jnp.float32)
            + jnp.dot(hs[T - 1 - t][:, H:], w_b,
                      preferred_element_type=jnp.float32)
            + bo)

    # Final states are both halves of the last fused step.
    hf_ref[...] = hs[T - 1][:, :H]
    hb_ref[...] = hs[T - 1][:, H:]


def bidirectional_rnn(x_tokens, params):
    """x_tokens: (batch, seq) int32.

    Returns (logits (seq*batch, vocab), (final_forward_state, final_backward_state)).
    """
    V, H = params["W_xh_forward"].shape
    B, T = x_tokens.shape
    tok_tm = x_tokens.T                                            # (T, B)

    # Embedding-style gather replaces the one-hot matmul; biases pre-folded.
    xp_f = jnp.take(params["W_xh_forward"], tok_tm, axis=0) + params["b_h_forward"]
    xp_b = jnp.take(params["W_xh_backward"], tok_tm, axis=0) + params["b_h_backward"]
    # Backward half pre-reversed in time so the kernel runs one t=0..T-1 loop.
    xp = jnp.concatenate([xp_f, xp_b[::-1]], axis=-1).astype(jnp.float32)  # (T,B,2H)

    zero = jnp.zeros((H, H), jnp.float32)
    whh_blk = jnp.block([[params["W_hh_forward"].astype(jnp.float32), zero],
                         [zero, params["W_hh_backward"].astype(jnp.float32)]])  # (2H,2H)

    who = params["W_ho"].astype(jnp.float32)                       # (2H, V)
    bo = params["b_o"].reshape(1, V).astype(jnp.float32)

    vmem = pl.BlockSpec(memory_space=pltpu.MemorySpace.VMEM)
    out_tbv, hf, hb = pl.pallas_call(
        _birnn_kernel,
        out_shape=(jax.ShapeDtypeStruct((T, B, V), jnp.float32),
                   jax.ShapeDtypeStruct((B, H), jnp.float32),
                   jax.ShapeDtypeStruct((B, H), jnp.float32)),
        in_specs=[vmem, vmem, vmem, vmem],
        out_specs=(vmem, vmem, vmem),
        compiler_params=pltpu.CompilerParams(
            vmem_limit_bytes=32 * 1024 * 1024),
    )(xp, whh_blk, who, bo)

    logits = out_tbv.reshape(T * B, V)    # contiguous reinterpretation, free
    return logits, (hf, hb)


def reference(x_tokens, params):
    """Pure-JAX port of the PyTorch forward (for correctness check)."""
    V, H = params["W_xh_forward"].shape
    xoh = jax.nn.one_hot(x_tokens.T, V, dtype=jnp.float32)         # (T, B, V)
    T, B, _ = xoh.shape
    hf = jnp.zeros((B, H), jnp.float32)
    fwd = []
    for t in range(T):
        hf = jnp.tanh(xoh[t] @ params["W_xh_forward"]
                      + hf @ params["W_hh_forward"] + params["b_h_forward"])
        fwd.append(hf)
    hb = jnp.zeros((B, H), jnp.float32)
    bwd = []
    for t in range(T - 1, -1, -1):
        hb = jnp.tanh(xoh[t] @ params["W_xh_backward"]
                      + hb @ params["W_hh_backward"] + params["b_h_backward"])
        bwd.append(hb)
    bwd = bwd[::-1]
    outs = [jnp.concatenate([f, b], axis=1) @ params["W_ho"] + params["b_o"]
            for f, b in zip(fwd, bwd)]
    return jnp.concatenate(outs, axis=0), (hf, hb)


if __name__ == "__main__":
    vocab_size, hidden_size = 16, 32
    batch, seq_len = 4, 8

    key = jax.random.PRNGKey(0)
    k = jax.random.split(key, 6)
    params = {
        "W_xh_forward": 0.01 * jax.random.normal(k[0], (vocab_size, hidden_size), jnp.float32),
        "W_hh_forward": 0.01 * jax.random.normal(k[1], (hidden_size, hidden_size), jnp.float32),
        "b_h_forward": jnp.zeros((hidden_size,), jnp.float32),
        "W_xh_backward": 0.01 * jax.random.normal(k[2], (vocab_size, hidden_size), jnp.float32),
        "W_hh_backward": 0.01 * jax.random.normal(k[3], (hidden_size, hidden_size), jnp.float32),
        "b_h_backward": jnp.zeros((hidden_size,), jnp.float32),
        "W_ho": 0.01 * jax.random.normal(k[4], (2 * hidden_size, vocab_size), jnp.float32),
        "b_o": jnp.zeros((vocab_size,), jnp.float32),
    }
    x_tokens = jax.random.randint(k[5], (batch, seq_len), 0, vocab_size, jnp.int32)

    logits, (hf, hb) = bidirectional_rnn(x_tokens, params)
    jax.block_until_ready((logits, hf, hb))

    ref_logits, (ref_hf, ref_hb) = reference(x_tokens, params)
    assert logits.shape == (seq_len * batch, vocab_size)
    assert jnp.allclose(logits, ref_logits, atol=1e-3), "logits mismatch"
    assert jnp.allclose(hf, ref_hf, atol=1e-3), "forward state mismatch"
    assert jnp.allclose(hb, ref_hb, atol=1e-3), "backward state mismatch"

    print("KERNEL_OK")
</pallas_src>

<mosaic_0001>
module attributes {stable_mosaic.version = 11 : i64} {
  func.func @_birnn_kernel(%arg0: memref<8x4x64xf32, #tpu.memory_space<vmem>>, %arg1: memref<64x64xf32, #tpu.memory_space<vmem>>, %arg2: memref<64x16xf32, #tpu.memory_space<vmem>>, %arg3: memref<1x16xf32, #tpu.memory_space<vmem>>, %arg4: memref<8x4x16xf32, #tpu.memory_space<vmem>>, %arg5: memref<4x32xf32, #tpu.memory_space<vmem>>, %arg6: memref<4x32xf32, #tpu.memory_space<vmem>>) attributes {dimension_semantics = [], scalar_prefetch = 0 : i64, scratch_operands = 0 : i64, tpu.core_type = #tpu.core_type<tc>} {
    %c0 = arith.constant 0 : index
    %c0_0 = arith.constant 0 : index
    %0 = vector.load %arg1[%c0, %c0_0] : memref<64x64xf32, #tpu.memory_space<vmem>>, vector<64x64xf32>
    %c0_1 = arith.constant 0 : index
    %c0_2 = arith.constant 0 : index
    %1 = vector.load %arg2[%c0_1, %c0_2] : memref<64x16xf32, #tpu.memory_space<vmem>>, vector<32x16xf32>
    %c32 = arith.constant 32 : index
    %c0_3 = arith.constant 0 : index
    %2 = vector.load %arg2[%c32, %c0_3] : memref<64x16xf32, #tpu.memory_space<vmem>>, vector<32x16xf32>
    %c0_4 = arith.constant 0 : index
    %c0_5 = arith.constant 0 : index
    %3 = vector.load %arg3[%c0_4, %c0_5] : memref<1x16xf32, #tpu.memory_space<vmem>>, vector<1x16xf32>
    %cst = arith.constant 0.000000e+00 : f32
    %4 = vector.broadcast %cst : f32 to vector<4x64xf32>
    %c0_6 = arith.constant 0 : index
    %c0_7 = arith.constant 0 : index
    %c0_8 = arith.constant 0 : index
    %5 = vector.load %arg0[%c0_6, %c0_7, %c0_8] : memref<8x4x64xf32, #tpu.memory_space<vmem>>, vector<1x4x64xf32>
    %6 = vector.shape_cast %5 : vector<1x4x64xf32> to vector<4x64xf32>
    %cst_9 = arith.constant dense<0.000000e+00> : vector<4x64xf32>
    %7 = tpu.matmul %4, %0, %cst_9 {dimension_numbers = #tpu.dot_dimension_numbers<[1], [0], [0], [1], [0, 0, 1, 1], [], []>} : vector<4x64xf32>, vector<64x64xf32>, vector<4x64xf32> -> vector<4x64xf32>
    %8 = arith.addf %6, %7 : vector<4x64xf32>
    %9 = math.tanh %8 : vector<4x64xf32>
    %c1 = arith.constant 1 : index
    %c0_10 = arith.constant 0 : index
    %c0_11 = arith.constant 0 : index
    %10 = vector.load %arg0[%c1, %c0_10, %c0_11] : memref<8x4x64xf32, #tpu.memory_space<vmem>>, vector<1x4x64xf32>
    %11 = vector.shape_cast %10 : vector<1x4x64xf32> to vector<4x64xf32>
    %cst_12 = arith.constant dense<0.000000e+00> : vector<4x64xf32>
    %12 = tpu.matmul %9, %0, %cst_12 {dimension_numbers = #tpu.dot_dimension_numbers<[1], [0], [0], [1], [0, 0, 1, 1], [], []>} : vector<4x64xf32>, vector<64x64xf32>, vector<4x64xf32> -> vector<4x64xf32>
    %13 = arith.addf %11, %12 : vector<4x64xf32>
    %14 = math.tanh %13 : vector<4x64xf32>
    %c2 = arith.constant 2 : index
    %c0_13 = arith.constant 0 : index
    %c0_14 = arith.constant 0 : index
    %15 = vector.load %arg0[%c2, %c0_13, %c0_14] : memref<8x4x64xf32, #tpu.memory_space<vmem>>, vector<1x4x64xf32>
    %16 = vector.shape_cast %15 : vector<1x4x64xf32> to vector<4x64xf32>
    %cst_15 = arith.constant dense<0.000000e+00> : vector<4x64xf32>
    %17 = tpu.matmul %14, %0, %cst_15 {dimension_numbers = #tpu.dot_dimension_numbers<[1], [0], [0], [1], [0, 0, 1, 1], [], []>} : vector<4x64xf32>, vector<64x64xf32>, vector<4x64xf32> -> vector<4x64xf32>
    %18 = arith.addf %16, %17 : vector<4x64xf32>
    %19 = math.tanh %18 : vector<4x64xf32>
    %c3 = arith.constant 3 : index
    %c0_16 = arith.constant 0 : index
    %c0_17 = arith.constant 0 : index
    %20 = vector.load %arg0[%c3, %c0_16, %c0_17] : memref<8x4x64xf32, #tpu.memory_space<vmem>>, vector<1x4x64xf32>
    %21 = vector.shape_cast %20 : vector<1x4x64xf32> to vector<4x64xf32>
    %cst_18 = arith.constant dense<0.000000e+00> : vector<4x64xf32>
    %22 = tpu.matmul %19, %0, %cst_18 {dimension_numbers = #tpu.dot_dimension_numbers<[1], [0], [0], [1], [0, 0, 1, 1], [], []>} : vector<4x64xf32>, vector<64x64xf32>, vector<4x64xf32> -> vector<4x64xf32>
    %23 = arith.addf %21, %22 : vector<4x64xf32>
    %24 = math.tanh %23 : vector<4x64xf32>
    %c4 = arith.constant 4 : index
    %c0_19 = arith.constant 0 : index
    %c0_20 = arith.constant 0 : index
    %25 = vector.load %arg0[%c4, %c0_19, %c0_20] : memref<8x4x64xf32, #tpu.memory_space<vmem>>, vector<1x4x64xf32>
    %26 = vector.shape_cast %25 : vector<1x4x64xf32> to vector<4x64xf32>
    %cst_21 = arith.constant dense<0.000000e+00> : vector<4x64xf32>
    %27 = tpu.matmul %24, %0, %cst_21 {dimension_numbers = #tpu.dot_dimension_numbers<[1], [0], [0], [1], [0, 0, 1, 1], [], []>} : vector<4x64xf32>, vector<64x64xf32>, vector<4x64xf32> -> vector<4x64xf32>
    %28 = arith.addf %26, %27 : vector<4x64xf32>
    %29 = math.tanh %28 : vector<4x64xf32>
    %c5 = arith.constant 5 : index
    %c0_22 = arith.constant 0 : index
    %c0_23 = arith.constant 0 : index
    %30 = vector.load %arg0[%c5, %c0_22, %c0_23] : memref<8x4x64xf32, #tpu.memory_space<vmem>>, vector<1x4x64xf32>
    %31 = vector.shape_cast %30 : vector<1x4x64xf32> to vector<4x64xf32>
    %cst_24 = arith.constant dense<0.000000e+00> : vector<4x64xf32>
    %32 = tpu.matmul %29, %0, %cst_24 {dimension_numbers = #tpu.dot_dimension_numbers<[1], [0], [0], [1], [0, 0, 1, 1], [], []>} : vector<4x64xf32>, vector<64x64xf32>, vector<4x64xf32> -> vector<4x64xf32>
    %33 = arith.addf %31, %32 : vector<4x64xf32>
    %34 = math.tanh %33 : vector<4x64xf32>
    %c6 = arith.constant 6 : index
    %c0_25 = arith.constant 0 : index
    %c0_26 = arith.constant 0 : index
    %35 = vector.load %arg0[%c6, %c0_25, %c0_26] : memref<8x4x64xf32, #tpu.memory_space<vmem>>, vector<1x4x64xf32>
    %36 = vector.shape_cast %35 : vector<1x4x64xf32> to vector<4x64xf32>
    %cst_27 = arith.constant dense<0.000000e+00> : vector<4x64xf32>
    %37 = tpu.matmul %34, %0, %cst_27 {dimension_numbers = #tpu.dot_dimension_numbers<[1], [0], [0], [1], [0, 0, 1, 1], [], []>} : vector<4x64xf32>, vector<64x64xf32>, vector<4x64xf32> -> vector<4x64xf32>
    %38 = arith.addf %36, %37 : vector<4x64xf32>
    %39 = math.tanh %38 : vector<4x64xf32>
    %c7 = arith.constant 7 : index
    %c0_28 = arith.constant 0 : index
    %c0_29 = arith.constant 0 : index
    %40 = vector.load %arg0[%c7, %c0_28, %c0_29] : memref<8x4x64xf32, #tpu.memory_space<vmem>>, vector<1x4x64xf32>
    %41 = vector.shape_cast %40 : vector<1x4x64xf32> to vector<4x64xf32>
    %cst_30 = arith.constant dense<0.000000e+00> : vector<4x64xf32>
    %42 = tpu.matmul %39, %0, %cst_30 {dimension_numbers = #tpu.dot_dimension_numbers<[1], [0], [0], [1], [0, 0, 1, 1], [], []>} : vector<4x64xf32>, vector<64x64xf32>, vector<4x64xf32> -> vector<4x64xf32>
    %43 = arith.addf %41, %42 : vector<4x64xf32>
    %44 = math.tanh %43 : vector<4x64xf32>
    %45 = vector.extract_strided_slice %9 {offsets = [0, 0], sizes = [4, 32], strides = [1, 1]} : vector<4x64xf32> to vector<4x32xf32>
    %cst_31 = arith.constant dense<0.000000e+00> : vector<4x16xf32>
    %46 = tpu.matmul %45, %1, %cst_31 {dimension_numbers = #tpu.dot_dimension_numbers<[1], [0], [0], [1], [0, 0, 1, 1], [], []>} : vector<4x32xf32>, vector<32x16xf32>, vector<4x16xf32> -> vector<4x16xf32>
    %47 = vector.extract_strided_slice %44 {offsets = [0, 32], sizes = [4, 32], strides = [1, 1]} : vector<4x64xf32> to vector<4x32xf32>
    %cst_32 = arith.constant dense<0.000000e+00> : vector<4x16xf32>
    %48 = tpu.matmul %47, %2, %cst_32 {dimension_numbers = #tpu.dot_dimension_numbers<[1], [0], [0], [1], [0, 0, 1, 1], [], []>} : vector<4x32xf32>, vector<32x16xf32>, vector<4x16xf32> -> vector<4x16xf32>
    %49 = arith.addf %46, %48 : vector<4x16xf32>
    %50 = vector.broadcast %3 : vector<1x16xf32> to vector<4x16xf32>
    %51 = arith.addf %49, %50 : vector<4x16xf32>
    %c0_33 = arith.constant 0 : index
    %c0_34 = arith.constant 0 : index
    %c0_35 = arith.constant 0 : index
    %52 = vector.load %arg4[%c0_33, %c0_34, %c0_35] : memref<8x4x16xf32, #tpu.memory_space<vmem>>, vector<1x4x16xf32>
    %53 = vector.shape_cast %52 : vector<1x4x16xf32> to vector<4x16xf32>
    %54 = vector.shape_cast %51 : vector<4x16xf32> to vector<1x4x16xf32>
    tpu.vector_store %arg4[%c0_33, %c0_34, %c0_35], %54 {strides = array<i32>} : memref<8x4x16xf32, #tpu.memory_space<vmem>>, vector<1x4x16xf32>,
    %55 = vector.extract_strided_slice %14 {offsets = [0, 0], sizes = [4, 32], strides = [1, 1]} : vector<4x64xf32> to vector<4x32xf32>
    %cst_36 = arith.constant dense<0.000000e+00> : vector<4x16xf32>
    %56 = tpu.matmul %55, %1, %cst_36 {dimension_numbers = #tpu.dot_dimension_numbers<[1], [0], [0], [1], [0, 0, 1, 1], [], []>} : vector<4x32xf32>, vector<32x16xf32>, vector<4x16xf32> -> vector<4x16xf32>
    %57 = vector.extract_strided_slice %39 {offsets = [0, 32], sizes = [4, 32], strides = [1, 1]} : vector<4x64xf32> to vector<4x32xf32>
    %cst_37 = arith.constant dense<0.000000e+00> : vector<4x16xf32>
    %58 = tpu.matmul %57, %2, %cst_37 {dimension_numbers = #tpu.dot_dimension_numbers<[1], [0], [0], [1], [0, 0, 1, 1], [], []>} : vector<4x32xf32>, vector<32x16xf32>, vector<4x16xf32> -> vector<4x16xf32>
    %59 = arith.addf %56, %58 : vector<4x16xf32>
    %60 = vector.broadcast %3 : vector<1x16xf32> to vector<4x16xf32>
    %61 = arith.addf %59, %60 : vector<4x16xf32>
    %c1_38 = arith.constant 1 : index
    %c0_39 = arith.constant 0 : index
    %c0_40 = arith.constant 0 : index
    %62 = vector.load %arg4[%c1_38, %c0_39, %c0_40] : memref<8x4x16xf32, #tpu.memory_space<vmem>>, vector<1x4x16xf32>
    %63 = vector.shape_cast %62 : vector<1x4x16xf32> to vector<4x16xf32>
    %64 = vector.shape_cast %61 : vector<4x16xf32> to vector<1x4x16xf32>
    tpu.vector_store %arg4[%c1_38, %c0_39, %c0_40], %64 {strides = array<i32>} : memref<8x4x16xf32, #tpu.memory_space<vmem>>, vector<1x4x16xf32>,
    %65 = vector.extract_strided_slice %19 {offsets = [0, 0], sizes = [4, 32], strides = [1, 1]} : vector<4x64xf32> to vector<4x32xf32>
    %cst_41 = arith.constant dense<0.000000e+00> : vector<4x16xf32>
    %66 = tpu.matmul %65, %1, %cst_41 {dimension_numbers = #tpu.dot_dimension_numbers<[1], [0], [0], [1], [0, 0, 1, 1], [], []>} : vector<4x32xf32>, vector<32x16xf32>, vector<4x16xf32> -> vector<4x16xf32>
    %67 = vector.extract_strided_slice %34 {offsets = [0, 32], sizes = [4, 32], strides = [1, 1]} : vector<4x64xf32> to vector<4x32xf32>
    %cst_42 = arith.constant dense<0.000000e+00> : vector<4x16xf32>
    %68 = tpu.matmul %67, %2, %cst_42 {dimension_numbers = #tpu.dot_dimension_numbers<[1], [0], [0], [1], [0, 0, 1, 1], [], []>} : vector<4x32xf32>, vector<32x16xf32>, vector<4x16xf32> -> vector<4x16xf32>
    %69 = arith.addf %66, %68 : vector<4x16xf32>
    %70 = vector.broadcast %3 : vector<1x16xf32> to vector<4x16xf32>
    %71 = arith.addf %69, %70 : vector<4x16xf32>
    %c2_43 = arith.constant 2 : index
    %c0_44 = arith.constant 0 : index
    %c0_45 = arith.constant 0 : index
    %72 = vector.load %arg4[%c2_43, %c0_44, %c0_45] : memref<8x4x16xf32, #tpu.memory_space<vmem>>, vector<1x4x16xf32>
    %73 = vector.shape_cast %72 : vector<1x4x16xf32> to vector<4x16xf32>
    %74 = vector.shape_cast %71 : vector<4x16xf32> to vector<1x4x16xf32>
    tpu.vector_store %arg4[%c2_43, %c0_44, %c0_45], %74 {strides = array<i32>} : memref<8x4x16xf32, #tpu.memory_space<vmem>>, vector<1x4x16xf32>,
    %75 = vector.extract_strided_slice %24 {offsets = [0, 0], sizes = [4, 32], strides = [1, 1]} : vector<4x64xf32> to vector<4x32xf32>
    %cst_46 = arith.constant dense<0.000000e+00> : vector<4x16xf32>
    %76 = tpu.matmul %75, %1, %cst_46 {dimension_numbers = #tpu.dot_dimension_numbers<[1], [0], [0], [1], [0, 0, 1, 1], [], []>} : vector<4x32xf32>, vector<32x16xf32>, vector<4x16xf32> -> vector<4x16xf32>
    %77 = vector.extract_strided_slice %29 {offsets = [0, 32], sizes = [4, 32], strides = [1, 1]} : vector<4x64xf32> to vector<4x32xf32>
    %cst_47 = arith.constant dense<0.000000e+00> : vector<4x16xf32>
    %78 = tpu.matmul %77, %2, %cst_47 {dimension_numbers = #tpu.dot_dimension_numbers<[1], [0], [0], [1], [0, 0, 1, 1], [], []>} : vector<4x32xf32>, vector<32x16xf32>, vector<4x16xf32> -> vector<4x16xf32>
    %79 = arith.addf %76, %78 : vector<4x16xf32>
    %80 = vector.broadcast %3 : vector<1x16xf32> to vector<4x16xf32>
    %81 = arith.addf %79, %80 : vector<4x16xf32>
    %c3_48 = arith.constant 3 : index
    %c0_49 = arith.constant 0 : index
    %c0_50 = arith.constant 0 : index
    %82 = vector.load %arg4[%c3_48, %c0_49, %c0_50] : memref<8x4x16xf32, #tpu.memory_space<vmem>>, vector<1x4x16xf32>
    %83 = vector.shape_cast %82 : vector<1x4x16xf32> to vector<4x16xf32>
    %84 = vector.shape_cast %81 : vector<4x16xf32> to vector<1x4x16xf32>
    tpu.vector_store %arg4[%c3_48, %c0_49, %c0_50], %84 {strides = array<i32>} : memref<8x4x16xf32, #tpu.memory_space<vmem>>, vector<1x4x16xf32>,
    %85 = vector.extract_strided_slice %29 {offsets = [0, 0], sizes = [4, 32], strides = [1, 1]} : vector<4x64xf32> to vector<4x32xf32>
    %cst_51 = arith.constant dense<0.000000e+00> : vector<4x16xf32>
    %86 = tpu.matmul %85, %1, %cst_51 {dimension_numbers = #tpu.dot_dimension_numbers<[1], [0], [0], [1], [0, 0, 1, 1], [], []>} : vector<4x32xf32>, vector<32x16xf32>, vector<4x16xf32> -> vector<4x16xf32>
    %87 = vector.extract_strided_slice %24 {offsets = [0, 32], sizes = [4, 32], strides = [1, 1]} : vector<4x64xf32> to vector<4x32xf32>
    %cst_52 = arith.constant dense<0.000000e+00> : vector<4x16xf32>
    %88 = tpu.matmul %87, %2, %cst_52 {dimension_numbers = #tpu.dot_dimension_numbers<[1], [0], [0], [1], [0, 0, 1, 1], [], []>} : vector<4x32xf32>, vector<32x16xf32>, vector<4x16xf32> -> vector<4x16xf32>
    %89 = arith.addf %86, %88 : vector<4x16xf32>
    %90 = vector.broadcast %3 : vector<1x16xf32> to vector<4x16xf32>
    %91 = arith.addf %89, %90 : vector<4x16xf32>
    %c4_53 = arith.constant 4 : index
    %c0_54 = arith.constant 0 : index
    %c0_55 = arith.constant 0 : index
    %92 = vector.load %arg4[%c4_53, %c0_54, %c0_55] : memref<8x4x16xf32, #tpu.memory_space<vmem>>, vector<1x4x16xf32>
    %93 = vector.shape_cast %92 : vector<1x4x16xf32> to vector<4x16xf32>
    %94 = vector.shape_cast %91 : vector<4x16xf32> to vector<1x4x16xf32>
    tpu.vector_store %arg4[%c4_53, %c0_54, %c0_55], %94 {strides = array<i32>} : memref<8x4x16xf32, #tpu.memory_space<vmem>>, vector<1x4x16xf32>,
    %95 = vector.extract_strided_slice %34 {offsets = [0, 0], sizes = [4, 32], strides = [1, 1]} : vector<4x64xf32> to vector<4x32xf32>
    %cst_56 = arith.constant dense<0.000000e+00> : vector<4x16xf32>
    %96 = tpu.matmul %95, %1, %cst_56 {dimension_numbers = #tpu.dot_dimension_numbers<[1], [0], [0], [1], [0, 0, 1, 1], [], []>} : vector<4x32xf32>, vector<32x16xf32>, vector<4x16xf32> -> vector<4x16xf32>
    %97 = vector.extract_strided_slice %19 {offsets = [0, 32], sizes = [4, 32], strides = [1, 1]} : vector<4x64xf32> to vector<4x32xf32>
    %cst_57 = arith.constant dense<0.000000e+00> : vector<4x16xf32>
    %98 = tpu.matmul %97, %2, %cst_57 {dimension_numbers = #tpu.dot_dimension_numbers<[1], [0], [0], [1], [0, 0, 1, 1], [], []>} : vector<4x32xf32>, vector<32x16xf32>, vector<4x16xf32> -> vector<4x16xf32>
    %99 = arith.addf %96, %98 : vector<4x16xf32>
    %100 = vector.broadcast %3 : vector<1x16xf32> to vector<4x16xf32>
    %101 = arith.addf %99, %100 : vector<4x16xf32>
    %c5_58 = arith.constant 5 : index
    %c0_59 = arith.constant 0 : index
    %c0_60 = arith.constant 0 : index
    %102 = vector.load %arg4[%c5_58, %c0_59, %c0_60] : memref<8x4x16xf32, #tpu.memory_space<vmem>>, vector<1x4x16xf32>
    %103 = vector.shape_cast %102 : vector<1x4x16xf32> to vector<4x16xf32>
    %104 = vector.shape_cast %101 : vector<4x16xf32> to vector<1x4x16xf32>
    tpu.vector_store %arg4[%c5_58, %c0_59, %c0_60], %104 {strides = array<i32>} : memref<8x4x16xf32, #tpu.memory_space<vmem>>, vector<1x4x16xf32>,
    %105 = vector.extract_strided_slice %39 {offsets = [0, 0], sizes = [4, 32], strides = [1, 1]} : vector<4x64xf32> to vector<4x32xf32>
    %cst_61 = arith.constant dense<0.000000e+00> : vector<4x16xf32>
    %106 = tpu.matmul %105, %1, %cst_61 {dimension_numbers = #tpu.dot_dimension_numbers<[1], [0], [0], [1], [0, 0, 1, 1], [], []>} : vector<4x32xf32>, vector<32x16xf32>, vector<4x16xf32> -> vector<4x16xf32>
    %107 = vector.extract_strided_slice %14 {offsets = [0, 32], sizes = [4, 32], strides = [1, 1]} : vector<4x64xf32> to vector<4x32xf32>
    %cst_62 = arith.constant dense<0.000000e+00> : vector<4x16xf32>
    %108 = tpu.matmul %107, %2, %cst_62 {dimension_numbers = #tpu.dot_dimension_numbers<[1], [0], [0], [1], [0, 0, 1, 1], [], []>} : vector<4x32xf32>, vector<32x16xf32>, vector<4x16xf32> -> vector<4x16xf32>
    %109 = arith.addf %106, %108 : vector<4x16xf32>
    %110 = vector.broadcast %3 : vector<1x16xf32> to vector<4x16xf32>
    %111 = arith.addf %109, %110 : vector<4x16xf32>
    %c6_63 = arith.constant 6 : index
    %c0_64 = arith.constant 0 : index
    %c0_65 = arith.constant 0 : index
    %112 = vector.load %arg4[%c6_63, %c0_64, %c0_65] : memref<8x4x16xf32, #tpu.memory_space<vmem>>, vector<1x4x16xf32>
    %113 = vector.shape_cast %112 : vector<1x4x16xf32> to vector<4x16xf32>
    %114 = vector.shape_cast %111 : vector<4x16xf32> to vector<1x4x16xf32>
    tpu.vector_store %arg4[%c6_63, %c0_64, %c0_65], %114 {strides = array<i32>} : memref<8x4x16xf32, #tpu.memory_space<vmem>>, vector<1x4x16xf32>,
    %115 = vector.extract_strided_slice %44 {offsets = [0, 0], sizes = [4, 32], strides = [1, 1]} : vector<4x64xf32> to vector<4x32xf32>
    %cst_66 = arith.constant dense<0.000000e+00> : vector<4x16xf32>
    %116 = tpu.matmul %115, %1, %cst_66 {dimension_numbers = #tpu.dot_dimension_numbers<[1], [0], [0], [1], [0, 0, 1, 1], [], []>} : vector<4x32xf32>, vector<32x16xf32>, vector<4x16xf32> -> vector<4x16xf32>
    %117 = vector.extract_strided_slice %9 {offsets = [0, 32], sizes = [4, 32], strides = [1, 1]} : vector<4x64xf32> to vector<4x32xf32>
    %cst_67 = arith.constant dense<0.000000e+00> : vector<4x16xf32>
    %118 = tpu.matmul %117, %2, %cst_67 {dimension_numbers = #tpu.dot_dimension_numbers<[1], [0], [0], [1], [0, 0, 1, 1], [], []>} : vector<4x32xf32>, vector<32x16xf32>, vector<4x16xf32> -> vector<4x16xf32>
    %119 = arith.addf %116, %118 : vector<4x16xf32>
    %120 = vector.broadcast %3 : vector<1x16xf32> to vector<4x16xf32>
    %121 = arith.addf %119, %120 : vector<4x16xf32>
    %c7_68 = arith.constant 7 : index
    %c0_69 = arith.constant 0 : index
    %c0_70 = arith.constant 0 : index
    %122 = vector.load %arg4[%c7_68, %c0_69, %c0_70] : memref<8x4x16xf32, #tpu.memory_space<vmem>>, vector<1x4x16xf32>
    %123 = vector.shape_cast %122 : vector<1x4x16xf32> to vector<4x16xf32>
    %124 = vector.shape_cast %121 : vector<4x16xf32> to vector<1x4x16xf32>
    tpu.vector_store %arg4[%c7_68, %c0_69, %c0_70], %124 {strides = array<i32>} : memref<8x4x16xf32, #tpu.memory_space<vmem>>, vector<1x4x16xf32>,
    %125 = vector.extract_strided_slice %44 {offsets = [0, 0], sizes = [4, 32], strides = [1, 1]} : vector<4x64xf32> to vector<4x32xf32>
    %c0_71 = arith.constant 0 : index
    %c0_72 = arith.constant 0 : index
    %126 = vector.load %arg5[%c0_71, %c0_72] : memref<4x32xf32, #tpu.memory_space<vmem>>, vector<4x32xf32>
    tpu.vector_store %arg5[%c0_71, %c0_72], %125 {strides = array<i32>} : memref<4x32xf32, #tpu.memory_space<vmem>>, vector<4x32xf32>,
    %127 = vector.extract_strided_slice %44 {offsets = [0, 32], sizes = [4, 32], strides = [1, 1]} : vector<4x64xf32> to vector<4x32xf32>
    %c0_73 = arith.constant 0 : index
    %c0_74 = arith.constant 0 : index
    %128 = vector.load %arg6[%c0_73, %c0_74] : memref<4x32xf32, #tpu.memory_space<vmem>>, vector<4x32xf32>
    tpu.vector_store %arg6[%c0_73, %c0_74], %127 {strides = array<i32>} : memref<4x32xf32, #tpu.memory_space<vmem>>, vector<4x32xf32>,
    return
  }
}

</mosaic_0001>

<llo_original>
// kernel: tpu_custom_call.1
$region0: #{tpu_custom_call.1}
  #allocation0 [shape = 'u32[]', space=smem, size = 0x4, offset = 0x4, fixed_abs, tag = 'smem constant byte address 0x4 - core index']
  #allocation1 [shape = 'u32[144,128]{1,0:T(1,128)}', space=vmem, size = 0x12000, scoped, tag = 'internal scratch']
  %s0 = inlined_call_operand.hbm [shape: f32[8,4,64], index: 0, kind: input, shape index: {}]
  %s1 = inlined_call_operand.vmem [shape: f32[64,64], index: 1, kind: input, shape index: {}]
  %s2 = inlined_call_operand.vmem [shape: f32[64,16], index: 2, kind: input, shape index: {}]
  %s3 = inlined_call_operand.vmem [shape: f32[1,16], index: 3, kind: input, shape index: {}]
  %s4 = inlined_call_operand.hbm [shape: f32[8,4,16], index: 4, kind: output, shape index: {0}]
  %s5 = inlined_call_operand.hbm [shape: f32[4,32], index: 5, kind: output, shape index: {1}]
  %s6 = inlined_call_operand.hbm [shape: f32[4,32], index: 6, kind: output, shape index: {2}]
  %7 = xla_tuple %s4, %s5, %s6
  %s8 = sld [smem:[#allocation0]]
  $region46: #{tpu_custom_call.1} parent=0
    _
  %s10 = ssub.s32 1, %s8
  %s11 = scalar_select 0, %s10, %s8
  $region1: #{tpu_custom_call.1} parent=0
    #allocation2 [shape = 'u8[16384]{0}', space=vmem, size = 0x4000, scoped, tag = 'input window, operand 0, single buffered']
    #allocation3 [shape = 's32[1]{0}', space=sflag, size = 0x4, scoped, tag = 'scoped memory for tpu_custom_call.1']
    #allocation4 [shape = 's32[1]{0}', space=sflag, size = 0x4, scoped, tag = 'scoped memory for tpu_custom_call.1']
    #allocation5 [shape = 'u8[16384]{0}', space=vmem, size = 0x4000, scoped, tag = 'output window, operand 0, single buffered']
    #allocation6 [shape = 'u8[2048]{0}', space=vmem, size = 0x800, scoped, tag = 'output window, operand 1, single buffered']
    #allocation7 [shape = 's32[1]{0}', space=sflag, size = 0x4, scoped, tag = 'scoped memory for tpu_custom_call.1']
    #allocation8 [shape = 'u8[2048]{0}', space=vmem, size = 0x800, scoped, tag = 'output window, operand 2, single buffered']
    %12 = vsyncpa [#allocation3], 0
    %13 = vsyncpa [#allocation4], 0
    %14 = vsyncpa [#allocation7], 0
    // Predicated region
    $region2: #{tpu_custom_call.1} parent=1 // pred_check
      _
    $region3: #{tpu_custom_call.1} parent=1 // pred_check_branch
      %16 = sbr.rel (0) target = $region5
    $region4: #{tpu_custom_call.1} parent=1 // pred_region
      %s18 = ssub.s32 512, 512
      %19 = vsyncadd [#allocation3], %s18
      %s20 = sshll.u32 [#allocation2], 4
      %s21 = int_to_ptr.vmem [resolvable:$true] %s20
      %26 = dma.hbm_to_vmem [thread:$0]  %s0, 512, %s21, [#allocation3], 64, 64, 4
    $region5: #{tpu_custom_call.1} parent=1 // pred_fallthru
      _
    // Predicated region
    $region6: #{tpu_custom_call.1} parent=1 // pred_check
      _
    $region7: #{tpu_custom_call.1} parent=1 // pred_check_branch
      %28 = sbr.rel (0) target = $region9
    $region8: #{tpu_custom_call.1} parent=1 // pred_region
      _
    $region9: #{tpu_custom_call.1} parent=1 // pred_fallthru
      _
    // Predicated region
    $region10: #{tpu_custom_call.1} parent=1 // pred_check
      _
    $region11: #{tpu_custom_call.1} parent=1 // pred_check_branch
      %30 = sbr.rel (0) target = $region13
    $region12: #{tpu_custom_call.1} parent=1 // pred_region
      _
    $region13: #{tpu_custom_call.1} parent=1 // pred_fallthru
      _
    // Predicated region
    $region14: #{tpu_custom_call.1} parent=1 // pred_check
      _
    $region15: #{tpu_custom_call.1} parent=1 // pred_check_branch
      %32 = sbr.rel (0) target = $region17
    $region16: #{tpu_custom_call.1} parent=1 // pred_region
      _
    $region17: #{tpu_custom_call.1} parent=1 // pred_fallthru
      _
    // Predicated region
    $region18: #{tpu_custom_call.1} parent=1 // pred_check
      _
    $region19: #{tpu_custom_call.1} parent=1 // pred_check_branch
      %34 = sbr.rel (0) target = $region21
    $region20: #{tpu_custom_call.1} parent=1 // pred_region
      %35 = dma.done [#allocation3], 512
    $region21: #{tpu_custom_call.1} parent=1 // pred_fallthru
      _
    %v36 = vld [vmem:[%s1] sm:$0xff]
    %v37 = vld [vmem:[%s1 + $0x8] sm:$0xff]
    %v38 = vld [vmem:[%s1 + $0x10] sm:$0xff]
    %v39 = vld [vmem:[%s1 + $0x18] sm:$0xff]
    %v40 = vld [vmem:[%s1 + $0x20] sm:$0xff]
    %v41 = vld [vmem:[%s1 + $0x28] sm:$0xff]
    %v42 = vld [vmem:[%s1 + $0x30] sm:$0xff]
    %v43 = vld [vmem:[%s1 + $0x38] sm:$0xff]
    %v44 = vld [vmem:[%s2] sm:$0xff]
    %v45 = vld [vmem:[%s2 + $0x8] sm:$0xff]
    %v46 = vld [vmem:[%s2 + $0x10] sm:$0xff]
    %v47 = vld [vmem:[%s2 + $0x18] sm:$0xff]
    %v48 = vld [vmem:[%s2 + $0x20] sm:$0xff]
    %v49 = vld [vmem:[%s2 + $0x28] sm:$0xff]
    %v50 = vld [vmem:[%s2 + $0x30] sm:$0xff]
    %v51 = vld [vmem:[%s2 + $0x38] sm:$0xff]
    %v52 = vld [vmem:[%s3] sm:$0x1]
    %v53 = vld [vmem:[#allocation2] sm:$0xf]
    %vm54 = vcmask 523264
    %v56 = vsel %vm54, 0.0, 0
    %58 = vmatprep.subr.mxu0 0.0
    %59 = vmatpush1.msra.mxu0 0.0
    %60 = vmatprep.subr.mxu0 0.0
    %61 = vmatpush1.msra.mxu0 0.0
    %62 = vmatprep.subr.mxu0 0.0
    %63 = vmatpush1.msra.mxu0 0.0
    %64 = vmatprep.subr.mxu0 0.0
    %65 = vmatpush1.msra.mxu0 0.0
    %66 = vmatprep.subr.mxu0 0.0
    %67 = vmatpush1.msra.mxu0 0.0
    %68 = vmatprep.subr.mxu0 0.0
    %69 = vmatpush1.msra.mxu0 0.0
    %70 = vmatprep.subr.mxu0 0.0
    %71 = vmatpush1.msra.mxu0 0.0
    %72 = vmatprep.subr.mxu0 0.0
    %73 = vmatpush1.msra.mxu0 0.0
    %74 = vmatprep.subr.mxu0 0.0
    %75 = vmatpush1.msra.mxu0 %v43
    %76 = vmatprep.subr.mxu0 0.0
    %77 = vmatpush1.msra.mxu0 %v42
    %78 = vmatprep.subr.mxu0 0.0
    %79 = vmatpush1.msra.mxu0 %v41
    %80 = vmatprep.subr.mxu0 0.0
    %81 = vmatpush1.msra.mxu0 %v40
    %82 = vmatprep.subr.mxu0 0.0
    %83 = vmatpush1.msra.mxu0 %v39
    %84 = vmatprep.subr.mxu0 0.0
    %85 = vmatpush1.msra.mxu0 %v38
    %86 = vmatprep.subr.mxu0 0.0
    %87 = vmatpush1.msra.mxu0 %v37
    %88 = vmatprep.subr.mxu0 0.0
    %89 = vmatpush1.msra.mxu0 %v36
    %90 = vmatprep.subr.mxu0 0.0
    %91 = vmatpush2.msra.mxu0 0.0
    %92 = vmatprep.subr.mxu0 0.0
    %93 = vmatpush2.msra.mxu0 0.0
    %94 = vmatprep.subr.mxu0 0.0
    %95 = vmatpush2.msra.mxu0 0.0
    %96 = vmatprep.subr.mxu0 0.0
    %97 = vmatpush2.msra.mxu0 0.0
    %98 = vmatprep.subr.mxu0 0.0
    %99 = vmatpush2.msra.mxu0 0.0
    %100 = vmatprep.subr.mxu0 0.0
    %101 = vmatpush2.msra.mxu0 0.0
    %102 = vmatprep.subr.mxu0 0.0
    %103 = vmatpush2.msra.mxu0 0.0
    %104 = vmatprep.subr.mxu0 0.0
    %105 = vmatpush2.msra.mxu0 0.0
    %106 = vmatprep.subr.mxu0 0.0
    %107 = vmatpush2.msra.mxu0 0.0
    %108 = vmatprep.subr.mxu0 0.0
    %109 = vmatpush2.msra.mxu0 0.0
    %110 = vmatprep.subr.mxu0 0.0
    %111 = vmatpush2.msra.mxu0 0.0
    %112 = vmatprep.subr.mxu0 0.0
    %113 = vmatpush2.msra.mxu0 0.0
    %114 = vmatprep.subr.mxu0 0.0
    %115 = vmatpush2.msra.mxu0 0.0
    %116 = vmatprep.subr.mxu0 0.0
    %117 = vmatpush2.msra.mxu0 0.0
    %118 = vmatprep.subr.mxu0 0.0
    %119 = vmatpush2.msra.mxu0 0.0
    %120 = vmatprep.subr.mxu0 0.0
    %121 = vmatpush2.msra.mxu0 0.0
    %122 = vmatprep.mubr.f32.mxu0 0.0
    %123 = vmatmul.mubr.f32.gmra.mxu0 %v56
    %v124 = vpop.f32.mrf.mxu0
    %v125 = vadd.f32 0.0, %v124
    %v126 = vpop.f32.mrf.mxu0
    %127 = vdwg.mxu0
    %v128 = vadd.f32 %v53, %v125
    %v129 = vtanh.pop %v128
    %s130 = scalar_lea.vmem [#allocation2], 4
    %v131 = vld [vmem:[%s130] sm:$0xf]
    %v133 = vsel %vm54, %v129, 0
    %135 = vmatprep.subr.mxu0 0.0
    %136 = vmatpush1.msra.mxu0 0.0
    %137 = vmatprep.subr.mxu0 0.0
    %138 = vmatpush1.msra.mxu0 0.0
    %139 = vmatprep.subr.mxu0 0.0
    %140 = vmatpush1.msra.mxu0 0.0
    %141 = vmatprep.subr.mxu0 0.0
    %142 = vmatpush1.msra.mxu0 0.0
    %143 = vmatprep.subr.mxu0 0.0
    %144 = vmatpush1.msra.mxu0 0.0
    %145 = vmatprep.subr.mxu0 0.0
    %146 = vmatpush1.msra.mxu0 0.0
    %147 = vmatprep.subr.mxu0 0.0
    %148 = vmatpush1.msra.mxu0 0.0
    %149 = vmatprep.subr.mxu0 0.0
    %150 = vmatpush1.msra.mxu0 0.0
    %151 = vmatprep.subr.mxu0 0.0
    %152 = vmatpush1.msra.mxu0 %v43
    %153 = vmatprep.subr.mxu0 0.0
    %154 = vmatpush1.msra.mxu0 %v42
    %155 = vmatprep.subr.mxu0 0.0
    %156 = vmatpush1.msra.mxu0 %v41
    %157 = vmatprep.subr.mxu0 0.0
    %158 = vmatpush1.msra.mxu0 %v40
    %159 = vmatprep.subr.mxu0 0.0
    %160 = vmatpush1.msra.mxu0 %v39
    %161 = vmatprep.subr.mxu0 0.0
    %162 = vmatpush1.msra.mxu0 %v38
    %163 = vmatprep.subr.mxu0 0.0
    %164 = vmatpush1.msra.mxu0 %v37
    %165 = vmatprep.subr.mxu0 0.0
    %166 = vmatpush1.msra.mxu0 %v36
    %167 = vmatprep.subr.mxu0 0.0
    %168 = vmatpush2.msra.mxu0 0.0
    %169 = vmatprep.subr.mxu0 0.0
    %170 = vmatpush2.msra.mxu0 0.0
    %171 = vmatprep.subr.mxu0 0.0
    %172 = vmatpush2.msra.mxu0 0.0
    %173 = vmatprep.subr.mxu0 0.0
    %174 = vmatpush2.msra.mxu0 0.0
    %175 = vmatprep.subr.mxu0 0.0
    %176 = vmatpush2.msra.mxu0 0.0
    %177 = vmatprep.subr.mxu0 0.0
    %178 = vmatpush2.msra.mxu0 0.0
    %179 = vmatprep.subr.mxu0 0.0
    %180 = vmatpush2.msra.mxu0 0.0
    %181 = vmatprep.subr.mxu0 0.0
    %182 = vmatpush2.msra.mxu0 0.0
    %183 = vmatprep.subr.mxu0 0.0
    %184 = vmatpush2.msra.mxu0 0.0
    %185 = vmatprep.subr.mxu0 0.0
    %186 = vmatpush2.msra.mxu0 0.0
    %187 = vmatprep.subr.mxu0 0.0
    %188 = vmatpush2.msra.mxu0 0.0
    %189 = vmatprep.subr.mxu0 0.0
    %190 = vmatpush2.msra.mxu0 0.0
    %191 = vmatprep.subr.mxu0 0.0
    %192 = vmatpush2.msra.mxu0 0.0
    %193 = vmatprep.subr.mxu0 0.0
    %194 = vmatpush2.msra.mxu0 0.0
    %195 = vmatprep.subr.mxu0 0.0
    %196 = vmatpush2.msra.mxu0 0.0
    %197 = vmatprep.subr.mxu0 0.0
    %198 = vmatpush2.msra.mxu0 0.0
    %199 = vmatprep.mubr.f32.mxu0 0.0
    %200 = vmatmul.mubr.f32.gmra.mxu0 %v133
    %v201 = vpop.f32.mrf.mxu0
    %v202 = vadd.f32 0.0, %v201
    %v203 = vpop.f32.mrf.mxu0
    %204 = vdwg.mxu0
    %v205 = vadd.f32 %v131, %v202
    %v206 = vtanh.pop %v205
    %s207 = scalar_lea.vmem [#allocation2], 8
    %v208 = vld [vmem:[%s207] sm:$0xf]
    %v210 = vsel %vm54, %v206, 0
    %212 = vmatprep.subr.mxu0 0.0
    %213 = vmatpush1.msra.mxu0 0.0
    %214 = vmatprep.subr.mxu0 0.0
    %215 = vmatpush1.msra.mxu0 0.0
    %216 = vmatprep.subr.mxu0 0.0
    %217 = vmatpush1.msra.mxu0 0.0
    %218 = vmatprep.subr.mxu0 0.0
    %219 = vmatpush1.msra.mxu0 0.0
    %220 = vmatprep.subr.mxu0 0.0
    %221 = vmatpush1.msra.mxu0 0.0
    %222 = vmatprep.subr.mxu0 0.0
    %223 = vmatpush1.msra.mxu0 0.0
    %224 = vmatprep.subr.mxu0 0.0
    %225 = vmatpush1.msra.mxu0 0.0
    %226 = vmatprep.subr.mxu0 0.0
    %227 = vmatpush1.msra.mxu0 0.0
    %228 = vmatprep.subr.mxu0 0.0
    %229 = vmatpush1.msra.mxu0 %v43
    %230 = vmatprep.subr.mxu0 0.0
    %231 = vmatpush1.msra.mxu0 %v42
    %232 = vmatprep.subr.mxu0 0.0
    %233 = vmatpush1.msra.mxu0 %v41
    %234 = vmatprep.subr.mxu0 0.0
    %235 = vmatpush1.msra.mxu0 %v40
    %236 = vmatprep.subr.mxu0 0.0
    %237 = vmatpush1.msra.mxu0 %v39
    %238 = vmatprep.subr.mxu0 0.0
    %239 = vmatpush1.msra.mxu0 %v38
    %240 = vmatprep.subr.mxu0 0.0
    %241 = vmatpush1.msra.mxu0 %v37
    %242 = vmatprep.subr.mxu0 0.0
    %243 = vmatpush1.msra.mxu0 %v36
    %244 = vmatprep.subr.mxu0 0.0
    %245 = vmatpush2.msra.mxu0 0.0
    %246 = vmatprep.subr.mxu0 0.0
    %247 = vmatpush2.msra.mxu0 0.0
    %248 = vmatprep.subr.mxu0 0.0
    %249 = vmatpush2.msra.mxu0 0.0
    %250 = vmatprep.subr.mxu0 0.0
    %251 = vmatpush2.msra.mxu0 0.0
    %252 = vmatprep.subr.mxu0 0.0
    %253 = vmatpush2.msra.mxu0 0.0
    %254 = vmatprep.subr.mxu0 0.0
    %255 = vmatpush2.msra.mxu0 0.0
    %256 = vmatprep.subr.mxu0 0.0
    %257 = vmatpush2.msra.mxu0 0.0
    %258 = vmatprep.subr.mxu0 0.0
    %259 = vmatpush2.msra.mxu0 0.0
    %260 = vmatprep.subr.mxu0 0.0
    %261 = vmatpush2.msra.mxu0 0.0
    %262 = vmatprep.subr.mxu0 0.0
    %263 = vmatpush2.msra.mxu0 0.0
    %264 = vmatprep.subr.mxu0 0.0
    %265 = vmatpush2.msra.mxu0 0.0
    %266 = vmatprep.subr.mxu0 0.0
    %267 = vmatpush2.msra.mxu0 0.0
    %268 = vmatprep.subr.mxu0 0.0
    %269 = vmatpush2.msra.mxu0 0.0
    %270 = vmatprep.subr.mxu0 0.0
    %271 = vmatpush2.msra.mxu0 0.0
    %272 = vmatprep.subr.mxu0 0.0
    %273 = vmatpush2.msra.mxu0 0.0
    %274 = vmatprep.subr.mxu0 0.0
    %275 = vmatpush2.msra.mxu0 0.0
    %276 = vmatprep.mubr.f32.mxu0 0.0
    %277 = vmatmul.mubr.f32.gmra.mxu0 %v210
    %v278 = vpop.f32.mrf.mxu0
    %v279 = vadd.f32 0.0, %v278
    %v280 = vpop.f32.mrf.mxu0
    %281 = vdwg.mxu0
    %v282 = vadd.f32 %v208, %v279
    %v283 = vtanh.pop %v282
    %s284 = scalar_lea.vmem [#allocation2], 12
    %v285 = vld [vmem:[%s284] sm:$0xf]
    %v287 = vsel %vm54, %v283, 0
    %289 = vmatprep.subr.mxu0 0.0
    %290 = vmatpush1.msra.mxu0 0.0
    %291 = vmatprep.subr.mxu0 0.0
    %292 = vmatpush1.msra.mxu0 0.0
    %293 = vmatprep.subr.mxu0 0.0
    %294 = vmatpush1.msra.mxu0 0.0
    %295 = vmatprep.subr.mxu0 0.0
    %296 = vmatpush1.msra.mxu0 0.0
    %297 = vmatprep.subr.mxu0 0.0
    %298 = vmatpush1.msra.mxu0 0.0
    %299 = vmatprep.subr.mxu0 0.0
    %300 = vmatpush1.msra.mxu0 0.0
    %301 = vmatprep.subr.mxu0 0.0
    %302 = vmatpush1.msra.mxu0 0.0
    %303 = vmatprep.subr.mxu0 0.0
    %304 = vmatpush1.msra.mxu0 0.0
    %305 = vmatprep.subr.mxu0 0.0
    %306 = vmatpush1.msra.mxu0 %v43
    %307 = vmatprep.subr.mxu0 0.0
    %308 = vmatpush1.msra.mxu0 %v42
    %309 = vmatprep.subr.mxu0 0.0
    %310 = vmatpush1.msra.mxu0 %v41
    %311 = vmatprep.subr.mxu0 0.0
    %312 = vmatpush1.msra.mxu0 %v40
    %313 = vmatprep.subr.mxu0 0.0
    %314 = vmatpush1.msra.mxu0 %v39
    %315 = vmatprep.subr.mxu0 0.0
    %316 = vmatpush1.msra.mxu0 %v38
    %317 = vmatprep.subr.mxu0 0.0
    %318 = vmatpush1.msra.mxu0 %v37
    %319 = vmatprep.subr.mxu0 0.0
    %320 = vmatpush1.msra.mxu0 %v36
    %321 = vmatprep.subr.mxu0 0.0
    %322 = vmatpush2.msra.mxu0 0.0
    %323 = vmatprep.subr.mxu0 0.0
    %324 = vmatpush2.msra.mxu0 0.0
    %325 = vmatprep.subr.mxu0 0.0
    %326 = vmatpush2.msra.mxu0 0.0
    %327 = vmatprep.subr.mxu0 0.0
    %328 = vmatpush2.msra.mxu0 0.0
    %329 = vmatprep.subr.mxu0 0.0
    %330 = vmatpush2.msra.mxu0 0.0
    %331 = vmatprep.subr.mxu0 0.0
    %332 = vmatpush2.msra.mxu0 0.0
    %333 = vmatprep.subr.mxu0 0.0
    %334 = vmatpush2.msra.mxu0 0.0
    %335 = vmatprep.subr.mxu0 0.0
    %336 = vmatpush2.msra.mxu0 0.0
    %337 = vmatprep.subr.mxu0 0.0
    %338 = vmatpush2.msra.mxu0 0.0
    %339 = vmatprep.subr.mxu0 0.0
    %340 = vmatpush2.msra.mxu0 0.0
    %341 = vmatprep.subr.mxu0 0.0
    %342 = vmatpush2.msra.mxu0 0.0
    %343 = vmatprep.subr.mxu0 0.0
    %344 = vmatpush2.msra.mxu0 0.0
    %345 = vmatprep.subr.mxu0 0.0
    %346 = vmatpush2.msra.mxu0 0.0
    %347 = vmatprep.subr.mxu0 0.0
    %348 = vmatpush2.msra.mxu0 0.0
    %349 = vmatprep.subr.mxu0 0.0
    %350 = vmatpush2.msra.mxu0 0.0
    %351 = vmatprep.subr.mxu0 0.0
    %352 = vmatpush2.msra.mxu0 0.0
    %353 = vmatprep.mubr.f32.mxu0 0.0
    %354 = vmatmul.mubr.f32.gmra.mxu0 %v287
    %v355 = vpop.f32.mrf.mxu0
    %v356 = vadd.f32 0.0, %v355
    %v357 = vpop.f32.mrf.mxu0
    %358 = vdwg.mxu0
    %v359 = vadd.f32 %v285, %v356
    %v360 = vtanh.pop %v359
    %s361 = scalar_lea.vmem [#allocation2], 16
    %v362 = vld [vmem:[%s361] sm:$0xf]
    %v364 = vsel %vm54, %v360, 0
    %366 = vmatprep.subr.mxu0 0.0
    %367 = vmatpush1.msra.mxu0 0.0
    %368 = vmatprep.subr.mxu0 0.0
    %369 = vmatpush1.msra.mxu0 0.0
    %370 = vmatprep.subr.mxu0 0.0
    %371 = vmatpush1.msra.mxu0 0.0
    %372 = vmatprep.subr.mxu0 0.0
    %373 = vmatpush1.msra.mxu0 0.0
    %374 = vmatprep.subr.mxu0 0.0
    %375 = vmatpush1.msra.mxu0 0.0
    %376 = vmatprep.subr.mxu0 0.0
    %377 = vmatpush1.msra.mxu0 0.0
    %378 = vmatprep.subr.mxu0 0.0
    %379 = vmatpush1.msra.mxu0 0.0
    %380 = vmatprep.subr.mxu0 0.0
    %381 = vmatpush1.msra.mxu0 0.0
    %382 = vmatprep.subr.mxu0 0.0
    %383 = vmatpush1.msra.mxu0 %v43
    %384 = vmatprep.subr.mxu0 0.0
    %385 = vmatpush1.msra.mxu0 %v42
    %386 = vmatprep.subr.mxu0 0.0
    %387 = vmatpush1.msra.mxu0 %v41
    %388 = vmatprep.subr.mxu0 0.0
    %389 = vmatpush1.msra.mxu0 %v40
    %390 = vmatprep.subr.mxu0 0.0
    %391 = vmatpush1.msra.mxu0 %v39
    %392 = vmatprep.subr.mxu0 0.0
    %393 = vmatpush1.msra.mxu0 %v38
    %394 = vmatprep.subr.mxu0 0.0
    %395 = vmatpush1.msra.mxu0 %v37
    %396 = vmatprep.subr.mxu0 0.0
    %397 = vmatpush1.msra.mxu0 %v36
    %398 = vmatprep.subr.mxu0 0.0
    %399 = vmatpush2.msra.mxu0 0.0
    %400 = vmatprep.subr.mxu0 0.0
    %401 = vmatpush2.msra.mxu0 0.0
    %402 = vmatprep.subr.mxu0 0.0
    %403 = vmatpush2.msra.mxu0 0.0
    %404 = vmatprep.subr.mxu0 0.0
    %405 = vmatpush2.msra.mxu0 0.0
    %406 = vmatprep.subr.mxu0 0.0
    %407 = vmatpush2.msra.mxu0 0.0
    %408 = vmatprep.subr.mxu0 0.0
    %409 = vmatpush2.msra.mxu0 0.0
    %410 = vmatprep.subr.mxu0 0.0
    %411 = vmatpush2.msra.mxu0 0.0
    %412 = vmatprep.subr.mxu0 0.0
    %413 = vmatpush2.msra.mxu0 0.0
    %414 = vmatprep.subr.mxu0 0.0
    %415 = vmatpush2.msra.mxu0 0.0
    %416 = vmatprep.subr.mxu0 0.0
    %417 = vmatpush2.msra.mxu0 0.0
    %418 = vmatprep.subr.mxu0 0.0
    %419 = vmatpush2.msra.mxu0 0.0
    %420 = vmatprep.subr.mxu0 0.0
    %421 = vmatpush2.msra.mxu0 0.0
    %422 = vmatprep.subr.mxu0 0.0
    %423 = vmatpush2.msra.mxu0 0.0
    %424 = vmatprep.subr.mxu0 0.0
    %425 = vmatpush2.msra.mxu0 0.0
    %426 = vmatprep.subr.mxu0 0.0
    %427 = vmatpush2.msra.mxu0 0.0
    %428 = vmatprep.subr.mxu0 0.0
    %429 = vmatpush2.msra.mxu0 0.0
    %430 = vmatprep.mubr.f32.mxu0 0.0
    %431 = vmatmul.mubr.f32.gmra.mxu0 %v364
    %v432 = vpop.f32.mrf.mxu0
    %v433 = vadd.f32 0.0, %v432
    %v434 = vpop.f32.mrf.mxu0
    %435 = vdwg.mxu0
    %v436 = vadd.f32 %v362, %v433
    %v437 = vtanh.pop %v436
    %s438 = scalar_lea.vmem [#allocation2], 20
    %v439 = vld [vmem:[%s438] sm:$0xf]
    %v441 = vsel %vm54, %v437, 0
    %443 = vmatprep.subr.mxu0 0.0
    %444 = vmatpush1.msra.mxu0 0.0
    %445 = vmatprep.subr.mxu0 0.0
    %446 = vmatpush1.msra.mxu0 0.0
    %447 = vmatprep.subr.mxu0 0.0
    %448 = vmatpush1.msra.mxu0 0.0
    %449 = vmatprep.subr.mxu0 0.0
    %450 = vmatpush1.msra.mxu0 0.0
    %451 = vmatprep.subr.mxu0 0.0
    %452 = vmatpush1.msra.mxu0 0.0
    %453 = vmatprep.subr.mxu0 0.0
    %454 = vmatpush1.msra.mxu0 0.0
    %455 = vmatprep.subr.mxu0 0.0
    %456 = vmatpush1.msra.mxu0 0.0
    %457 = vmatprep.subr.mxu0 0.0
    %458 = vmatpush1.msra.mxu0 0.0
    %459 = vmatprep.subr.mxu0 0.0
    %460 = vmatpush1.msra.mxu0 %v43
    %461 = vmatprep.subr.mxu0 0.0
    %462 = vmatpush1.msra.mxu0 %v42
    %463 = vmatprep.subr.mxu0 0.0
    %464 = vmatpush1.msra.mxu0 %v41
    %465 = vmatprep.subr.mxu0 0.0
    %466 = vmatpush1.msra.mxu0 %v40
    %467 = vmatprep.subr.mxu0 0.0
    %468 = vmatpush1.msra.mxu0 %v39
    %469 = vmatprep.subr.mxu0 0.0
    %470 = vmatpush1.msra.mxu0 %v38
    %471 = vmatprep.subr.mxu0 0.0
    %472 = vmatpush1.msra.mxu0 %v37
    %473 = vmatprep.subr.mxu0 0.0
    %474 = vmatpush1.msra.mxu0 %v36
    %475 = vmatprep.subr.mxu0 0.0
    %476 = vmatpush2.msra.mxu0 0.0
    %477 = vmatprep.subr.mxu0 0.0
    %478 = vmatpush2.msra.mxu0 0.0
    %479 = vmatprep.subr.mxu0 0.0
    %480 = vmatpush2.msra.mxu0 0.0
    %481 = vmatprep.subr.mxu0 0.0
    %482 = vmatpush2.msra.mxu0 0.0
    %483 = vmatprep.subr.mxu0 0.0
    %484 = vmatpush2.msra.mxu0 0.0
    %485 = vmatprep.subr.mxu0 0.0
    %486 = vmatpush2.msra.mxu0 0.0
    %487 = vmatprep.subr.mxu0 0.0
    %488 = vmatpush2.msra.mxu0 0.0
    %489 = vmatprep.subr.mxu0 0.0
    %490 = vmatpush2.msra.mxu0 0.0
    %491 = vmatprep.subr.mxu0 0.0
    %492 = vmatpush2.msra.mxu0 0.0
    %493 = vmatprep.subr.mxu0 0.0
    %494 = vmatpush2.msra.mxu0 0.0
    %495 = vmatprep.subr.mxu0 0.0
    %496 = vmatpush2.msra.mxu0 0.0
    %497 = vmatprep.subr.mxu0 0.0
    %498 = vmatpush2.msra.mxu0 0.0
    %499 = vmatprep.subr.mxu0 0.0
    %500 = vmatpush2.msra.mxu0 0.0
    %501 = vmatprep.subr.mxu0 0.0
    %502 = vmatpush2.msra.mxu0 0.0
    %503 = vmatprep.subr.mxu0 0.0
    %504 = vmatpush2.msra.mxu0 0.0
    %505 = vmatprep.subr.mxu0 0.0
    %506 = vmatpush2.msra.mxu0 0.0
    %507 = vmatprep.mubr.f32.mxu0 0.0
    %508 = vmatmul.mubr.f32.gmra.mxu0 %v441
    %v509 = vpop.f32.mrf.mxu0
    %v510 = vadd.f32 0.0, %v509
    %v511 = vpop.f32.mrf.mxu0
    %512 = vdwg.mxu0
    %v513 = vadd.f32 %v439, %v510
    %v514 = vtanh.pop %v513
    %s515 = scalar_lea.vmem [#allocation2], 24
    %v516 = vld [vmem:[%s515] sm:$0xf]
    %v518 = vsel %vm54, %v514, 0
    %520 = vmatprep.subr.mxu0 0.0
    %521 = vmatpush1.msra.mxu0 0.0
    %522 = vmatprep.subr.mxu0 0.0
    %523 = vmatpush1.msra.mxu0 0.0
    %524 = vmatprep.subr.mxu0 0.0
    %525 = vmatpush1.msra.mxu0 0.0
    %526 = vmatprep.subr.mxu0 0.0
    %527 = vmatpush1.msra.mxu0 0.0
    %528 = vmatprep.subr.mxu0 0.0
    %529 = vmatpush1.msra.mxu0 0.0
    %530 = vmatprep.subr.mxu0 0.0
    %531 = vmatpush1.msra.mxu0 0.0
    %532 = vmatprep.subr.mxu0 0.0
    %533 = vmatpush1.msra.mxu0 0.0
    %534 = vmatprep.subr.mxu0 0.0
    %535 = vmatpush1.msra.mxu0 0.0
    %536 = vmatprep.subr.mxu0 0.0
    %537 = vmatpush1.msra.mxu0 %v43
    %538 = vmatprep.subr.mxu0 0.0
    %539 = vmatpush1.msra.mxu0 %v42
    %540 = vmatprep.subr.mxu0 0.0
    %541 = vmatpush1.msra.mxu0 %v41
    %542 = vmatprep.subr.mxu0 0.0
    %543 = vmatpush1.msra.mxu0 %v40
    %544 = vmatprep.subr.mxu0 0.0
    %545 = vmatpush1.msra.mxu0 %v39
    %546 = vmatprep.subr.mxu0 0.0
    %547 = vmatpush1.msra.mxu0 %v38
    %548 = vmatprep.subr.mxu0 0.0
    %549 = vmatpush1.msra.mxu0 %v37
    %550 = vmatprep.subr.mxu0 0.0
    %551 = vmatpush1.msra.mxu0 %v36
    %552 = vmatprep.subr.mxu0 0.0
    %553 = vmatpush2.msra.mxu0 0.0
    %554 = vmatprep.subr.mxu0 0.0
    %555 = vmatpush2.msra.mxu0 0.0
    %556 = vmatprep.subr.mxu0 0.0
    %557 = vmatpush2.msra.mxu0 0.0
    %558 = vmatprep.subr.mxu0 0.0
    %559 = vmatpush2.msra.mxu0 0.0
    %560 = vmatprep.subr.mxu0 0.0
    %561 = vmatpush2.msra.mxu0 0.0
    %562 = vmatprep.subr.mxu0 0.0
    %563 = vmatpush2.msra.mxu0 0.0
    %564 = vmatprep.subr.mxu0 0.0
    %565 = vmatpush2.msra.mxu0 0.0
    %566 = vmatprep.subr.mxu0 0.0
    %567 = vmatpush2.msra.mxu0 0.0
    %568 = vmatprep.subr.mxu0 0.0
    %569 = vmatpush2.msra.mxu0 0.0
    %570 = vmatprep.subr.mxu0 0.0
    %571 = vmatpush2.msra.mxu0 0.0
    %572 = vmatprep.subr.mxu0 0.0
    %573 = vmatpush2.msra.mxu0 0.0
    %574 = vmatprep.subr.mxu0 0.0
    %575 = vmatpush2.msra.mxu0 0.0
    %576 = vmatprep.subr.mxu0 0.0
    %577 = vmatpush2.msra.mxu0 0.0
    %578 = vmatprep.subr.mxu0 0.0
    %579 = vmatpush2.msra.mxu0 0.0
    %580 = vmatprep.subr.mxu0 0.0
    %581 = vmatpush2.msra.mxu0 0.0
    %582 = vmatprep.subr.mxu0 0.0
    %583 = vmatpush2.msra.mxu0 0.0
    %584 = vmatprep.mubr.f32.mxu0 0.0
    %585 = vmatmul.mubr.f32.gmra.mxu0 %v518
    %v586 = vpop.f32.mrf.mxu0
    %v587 = vadd.f32 0.0, %v586
    %v588 = vpop.f32.mrf.mxu0
    %589 = vdwg.mxu0
    %v590 = vadd.f32 %v516, %v587
    %v591 = vtanh.pop %v590
    %s592 = scalar_lea.vmem [#allocation2], 28
    %v593 = vld [vmem:[%s592] sm:$0xf]
    %v595 = vsel %vm54, %v591, 0
    %597 = vmatprep.subr.mxu0 0.0
    %598 = vmatpush1.msra.mxu0 0.0
    %599 = vmatprep.subr.mxu0 0.0
    %600 = vmatpush1.msra.mxu0 0.0
    %601 = vmatprep.subr.mxu0 0.0
    %602 = vmatpush1.msra.mxu0 0.0
    %603 = vmatprep.subr.mxu0 0.0
    %604 = vmatpush1.msra.mxu0 0.0
    %605 = vmatprep.subr.mxu0 0.0
    %606 = vmatpush1.msra.mxu0 0.0
    %607 = vmatprep.subr.mxu0 0.0
    %608 = vmatpush1.msra.mxu0 0.0
    %609 = vmatprep.subr.mxu0 0.0
    %610 = vmatpush1.msra.mxu0 0.0
    %611 = vmatprep.subr.mxu0 0.0
    %612 = vmatpush1.msra.mxu0 0.0
    %613 = vmatprep.subr.mxu0 0.0
    %614 = vmatpush1.msra.mxu0 %v43
    %615 = vmatprep.subr.mxu0 0.0
    %616 = vmatpush1.msra.mxu0 %v42
    %617 = vmatprep.subr.mxu0 0.0
    %618 = vmatpush1.msra.mxu0 %v41
    %619 = vmatprep.subr.mxu0 0.0
    %620 = vmatpush1.msra.mxu0 %v40
    %621 = vmatprep.subr.mxu0 0.0
    %622 = vmatpush1.msra.mxu0 %v39
    %623 = vmatprep.subr.mxu0 0.0
    %624 = vmatpush1.msra.mxu0 %v38
    %625 = vmatprep.subr.mxu0 0.0
    %626 = vmatpush1.msra.mxu0 %v37
    %627 = vmatprep.subr.mxu0 0.0
    %628 = vmatpush1.msra.mxu0 %v36
    %629 = vmatprep.subr.mxu0 0.0
    %630 = vmatpush2.msra.mxu0 0.0
    %631 = vmatprep.subr.mxu0 0.0
    %632 = vmatpush2.msra.mxu0 0.0
    %633 = vmatprep.subr.mxu0 0.0
    %634 = vmatpush2.msra.mxu0 0.0
    %635 = vmatprep.subr.mxu0 0.0
    %636 = vmatpush2.msra.mxu0 0.0
    %637 = vmatprep.subr.mxu0 0.0
    %638 = vmatpush2.msra.mxu0 0.0
    %639 = vmatprep.subr.mxu0 0.0
    %640 = vmatpush2.msra.mxu0 0.0
    %641 = vmatprep.subr.mxu0 0.0
    %642 = vmatpush2.msra.mxu0 0.0
    %643 = vmatprep.subr.mxu0 0.0
    %644 = vmatpush2.msra.mxu0 0.0
    %645 = vmatprep.subr.mxu0 0.0
    %646 = vmatpush2.msra.mxu0 0.0
    %647 = vmatprep.subr.mxu0 0.0
    %648 = vmatpush2.msra.mxu0 0.0
    %649 = vmatprep.subr.mxu0 0.0
    %650 = vmatpush2.msra.mxu0 0.0
    %651 = vmatprep.subr.mxu0 0.0
    %652 = vmatpush2.msra.mxu0 0.0
    %653 = vmatprep.subr.mxu0 0.0
    %654 = vmatpush2.msra.mxu0 0.0
    %655 = vmatprep.subr.mxu0 0.0
    %656 = vmatpush2.msra.mxu0 0.0
    %657 = vmatprep.subr.mxu0 0.0
    %658 = vmatpush2.msra.mxu0 0.0
    %659 = vmatprep.subr.mxu0 0.0
    %660 = vmatpush2.msra.mxu0 0.0
    %661 = vmatprep.mubr.f32.mxu0 0.0
    %662 = vmatmul.mubr.f32.gmra.mxu0 %v595
    %v663 = vpop.f32.mrf.mxu0
    %v664 = vadd.f32 0.0, %v663
    %v665 = vpop.f32.mrf.mxu0
    %666 = vdwg.mxu0
    %v667 = vadd.f32 %v593, %v664
    %v668 = vtanh.pop %v667
    %670 = vrot.lane.b32.xlu0 %v668, 96
    %v671 = vpop.permute.xlu0 %670
    %vm672 = vcmask 261120
    %v673 = vsel %vm672, %v671, 0
    %675 = vmatprep.subr.mxu0 0.0
    %676 = vmatpush1.msra.mxu0 0.0
    %677 = vmatprep.subr.mxu0 0.0
    %678 = vmatpush1.msra.mxu0 0.0
    %679 = vmatprep.subr.mxu0 0.0
    %680 = vmatpush1.msra.mxu0 0.0
    %681 = vmatprep.subr.mxu0 0.0
    %682 = vmatpush1.msra.mxu0 0.0
    %683 = vmatprep.subr.mxu0 0.0
    %684 = vmatpush1.msra.mxu0 0.0
    %685 = vmatprep.subr.mxu0 0.0
    %686 = vmatpush1.msra.mxu0 0.0
    %687 = vmatprep.subr.mxu0 0.0
    %688 = vmatpush1.msra.mxu0 0.0
    %689 = vmatprep.subr.mxu0 0.0
    %690 = vmatpush1.msra.mxu0 0.0
    %691 = vmatprep.subr.mxu0 0.0
    %692 = vmatpush1.msra.mxu0 0.0
    %693 = vmatprep.subr.mxu0 0.0
    %694 = vmatpush1.msra.mxu0 0.0
    %695 = vmatprep.subr.mxu0 0.0
    %696 = vmatpush1.msra.mxu0 0.0
    %697 = vmatprep.subr.mxu0 0.0
    %698 = vmatpush1.msra.mxu0 0.0
    %699 = vmatprep.subr.mxu0 0.0
    %700 = vmatpush1.msra.mxu0 %v51
    %701 = vmatprep.subr.mxu0 0.0
    %702 = vmatpush1.msra.mxu0 %v50
    %703 = vmatprep.subr.mxu0 0.0
    %704 = vmatpush1.msra.mxu0 %v49
    %705 = vmatprep.subr.mxu0 0.0
    %706 = vmatpush1.msra.mxu0 %v48
    %707 = vmatprep.subr.mxu0 0.0
    %708 = vmatpush2.msra.mxu0 0.0
    %709 = vmatprep.subr.mxu0 0.0
    %710 = vmatpush2.msra.mxu0 0.0
    %711 = vmatprep.subr.mxu0 0.0
    %712 = vmatpush2.msra.mxu0 0.0
    %713 = vmatprep.subr.mxu0 0.0
    %714 = vmatpush2.msra.mxu0 0.0
    %715 = vmatprep.subr.mxu0 0.0
    %716 = vmatpush2.msra.mxu0 0.0
    %717 = vmatprep.subr.mxu0 0.0
    %718 = vmatpush2.msra.mxu0 0.0
    %719 = vmatprep.subr.mxu0 0.0
    %720 = vmatpush2.msra.mxu0 0.0
    %721 = vmatprep.subr.mxu0 0.0
    %722 = vmatpush2.msra.mxu0 0.0
    %723 = vmatprep.subr.mxu0 0.0
    %724 = vmatpush2.msra.mxu0 0.0
    %725 = vmatprep.subr.mxu0 0.0
    %726 = vmatpush2.msra.mxu0 0.0
    %727 = vmatprep.subr.mxu0 0.0
    %728 = vmatpush2.msra.mxu0 0.0
    %729 = vmatprep.subr.mxu0 0.0
    %730 = vmatpush2.msra.mxu0 0.0
    %731 = vmatprep.subr.mxu0 0.0
    %732 = vmatpush2.msra.mxu0 0.0
    %733 = vmatprep.subr.mxu0 0.0
    %734 = vmatpush2.msra.mxu0 0.0
    %735 = vmatprep.subr.mxu0 0.0
    %736 = vmatpush2.msra.mxu0 0.0
    %737 = vmatprep.subr.mxu0 0.0
    %738 = vmatpush2.msra.mxu0 0.0
    %739 = vmatprep.mubr.f32.mxu0 0.0
    %740 = vmatmul.mubr.f32.gmra.mxu0 %v673
    %v741 = vpop.f32.mrf.mxu0
    %v742 = vadd.f32 0.0, %v741
    %v743 = vpop.f32.mrf.mxu0
    %744 = vdwg.mxu0
    %v745 = vsel %vm672, %v129, 0
    %747 = vmatprep.subr.mxu0 0.0
    %748 = vmatpush1.msra.mxu0 0.0
    %749 = vmatprep.subr.mxu0 0.0
    %750 = vmatpush1.msra.mxu0 0.0
    %751 = vmatprep.subr.mxu0 0.0
    %752 = vmatpush1.msra.mxu0 0.0
    %753 = vmatprep.subr.mxu0 0.0
    %754 = vmatpush1.msra.mxu0 0.0
    %755 = vmatprep.subr.mxu0 0.0
    %756 = vmatpush1.msra.mxu0 0.0
    %757 = vmatprep.subr.mxu0 0.0
    %758 = vmatpush1.msra.mxu0 0.0
    %759 = vmatprep.subr.mxu0 0.0
    %760 = vmatpush1.msra.mxu0 0.0
    %761 = vmatprep.subr.mxu0 0.0
    %762 = vmatpush1.msra.mxu0 0.0
    %763 = vmatprep.subr.mxu0 0.0
    %764 = vmatpush1.msra.mxu0 0.0
    %765 = vmatprep.subr.mxu0 0.0
    %766 = vmatpush1.msra.mxu0 0.0
    %767 = vmatprep.subr.mxu0 0.0
    %768 = vmatpush1.msra.mxu0 0.0
    %769 = vmatprep.subr.mxu0 0.0
    %770 = vmatpush1.msra.mxu0 0.0
    %771 = vmatprep.subr.mxu0 0.0
    %772 = vmatpush1.msra.mxu0 %v47
    %773 = vmatprep.subr.mxu0 0.0
    %774 = vmatpush1.msra.mxu0 %v46
    %775 = vmatprep.subr.mxu0 0.0
    %776 = vmatpush1.msra.mxu0 %v45
    %777 = vmatprep.subr.mxu0 0.0
    %778 = vmatpush1.msra.mxu0 %v44
    %779 = vmatprep.subr.mxu0 0.0
    %780 = vmatpush2.msra.mxu0 0.0
    %781 = vmatprep.subr.mxu0 0.0
    %782 = vmatpush2.msra.mxu0 0.0
    %783 = vmatprep.subr.mxu0 0.0
    %784 = vmatpush2.msra.mxu0 0.0
    %785 = vmatprep.subr.mxu0 0.0
    %786 = vmatpush2.msra.mxu0 0.0
    %787 = vmatprep.subr.mxu0 0.0
    %788 = vmatpush2.msra.mxu0 0.0
    %789 = vmatprep.subr.mxu0 0.0
    %790 = vmatpush2.msra.mxu0 0.0
    %791 = vmatprep.subr.mxu0 0.0
    %792 = vmatpush2.msra.mxu0 0.0
    %793 = vmatprep.subr.mxu0 0.0
    %794 = vmatpush2.msra.mxu0 0.0
    %795 = vmatprep.subr.mxu0 0.0
    %796 = vmatpush2.msra.mxu0 0.0
    %797 = vmatprep.subr.mxu0 0.0
    %798 = vmatpush2.msra.mxu0 0.0
    %799 = vmatprep.subr.mxu0 0.0
    %800 = vmatpush2.msra.mxu0 0.0
    %801 = vmatprep.subr.mxu0 0.0
    %802 = vmatpush2.msra.mxu0 0.0
    %803 = vmatprep.subr.mxu0 0.0
    %804 = vmatpush2.msra.mxu0 0.0
    %805 = vmatprep.subr.mxu0 0.0
    %806 = vmatpush2.msra.mxu0 0.0
    %807 = vmatprep.subr.mxu0 0.0
    %808 = vmatpush2.msra.mxu0 0.0
    %809 = vmatprep.subr.mxu0 0.0
    %810 = vmatpush2.msra.mxu0 0.0
    %811 = vmatprep.mubr.f32.mxu0 0.0
    %812 = vmatmul.mubr.f32.gmra.mxu0 %v745
    %v813 = vpop.f32.mrf.mxu0
    %v814 = vadd.f32 %v742, %v813
    %v815 = vpop.f32.mrf.mxu0
    %816 = vdwg.mxu0
    %v818 = vlaneseq
    %v819 = vshrl.u32 %v818, 7
    %v820 = vsub.s32 0, %v819
    %v821 = vrot.slane %v52, %v820
    %v823 = vadd.f32 %v814, %v821
    %vm824 = vcmask 125952
    %825 = vst.msk [vmem:[#allocation5] sm:$0xf] %vm824, %v823
    %826 = vrot.lane.b32.xlu0 %v591, 96
    %v827 = vpop.permute.xlu0 %826
    %v828 = vsel %vm672, %v827, 0
    %830 = vmatprep.subr.mxu0 0.0
    %831 = vmatpush1.msra.mxu0 0.0
    %832 = vmatprep.subr.mxu0 0.0
    %833 = vmatpush1.msra.mxu0 0.0
    %834 = vmatprep.subr.mxu0 0.0
    %835 = vmatpush1.msra.mxu0 0.0
    %836 = vmatprep.subr.mxu0 0.0
    %837 = vmatpush1.msra.mxu0 0.0
    %838 = vmatprep.subr.mxu0 0.0
    %839 = vmatpush1.msra.mxu0 0.0
    %840 = vmatprep.subr.mxu0 0.0
    %841 = vmatpush1.msra.mxu0 0.0
    %842 = vmatprep.subr.mxu0 0.0
    %843 = vmatpush1.msra.mxu0 0.0
    %844 = vmatprep.subr.mxu0 0.0
    %845 = vmatpush1.msra.mxu0 0.0
    %846 = vmatprep.subr.mxu0 0.0
    %847 = vmatpush1.msra.mxu0 0.0
    %848 = vmatprep.subr.mxu0 0.0
    %849 = vmatpush1.msra.mxu0 0.0
    %850 = vmatprep.subr.mxu0 0.0
    %851 = vmatpush1.msra.mxu0 0.0
    %852 = vmatprep.subr.mxu0 0.0
    %853 = vmatpush1.msra.mxu0 0.0
    %854 = vmatprep.subr.mxu0 0.0
    %855 = vmatpush1.msra.mxu0 %v51
    %856 = vmatprep.subr.mxu0 0.0
    %857 = vmatpush1.msra.mxu0 %v50
    %858 = vmatprep.subr.mxu0 0.0
    %859 = vmatpush1.msra.mxu0 %v49
    %860 = vmatprep.subr.mxu0 0.0
    %861 = vmatpush1.msra.mxu0 %v48
    %862 = vmatprep.subr.mxu0 0.0
    %863 = vmatpush2.msra.mxu0 0.0
    %864 = vmatprep.subr.mxu0 0.0
    %865 = vmatpush2.msra.mxu0 0.0
    %866 = vmatprep.subr.mxu0 0.0
    %867 = vmatpush2.msra.mxu0 0.0
    %868 = vmatprep.subr.mxu0 0.0
    %869 = vmatpush2.msra.mxu0 0.0
    %870 = vmatprep.subr.mxu0 0.0
    %871 = vmatpush2.msra.mxu0 0.0
    %872 = vmatprep.subr.mxu0 0.0
    %873 = vmatpush2.msra.mxu0 0.0
    %874 = vmatprep.subr.mxu0 0.0
    %875 = vmatpush2.msra.mxu0 0.0
    %876 = vmatprep.subr.mxu0 0.0
    %877 = vmatpush2.msra.mxu0 0.0
    %878 = vmatprep.subr.mxu0 0.0
    %879 = vmatpush2.msra.mxu0 0.0
    %880 = vmatprep.subr.mxu0 0.0
    %881 = vmatpush2.msra.mxu0 0.0
    %882 = vmatprep.subr.mxu0 0.0
    %883 = vmatpush2.msra.mxu0 0.0
    %884 = vmatprep.subr.mxu0 0.0
    %885 = vmatpush2.msra.mxu0 0.0
    %886 = vmatprep.subr.mxu0 0.0
    %887 = vmatpush2.msra.mxu0 0.0
    %888 = vmatprep.subr.mxu0 0.0
    %889 = vmatpush2.msra.mxu0 0.0
    %890 = vmatprep.subr.mxu0 0.0
    %891 = vmatpush2.msra.mxu0 0.0
    %892 = vmatprep.subr.mxu0 0.0
    %893 = vmatpush2.msra.mxu0 0.0
    %894 = vmatprep.mubr.f32.mxu0 0.0
    %895 = vmatmul.mubr.f32.gmra.mxu0 %v828
    %v896 = vpop.f32.mrf.mxu0
    %v897 = vadd.f32 0.0, %v896
    %v898 = vpop.f32.mrf.mxu0
    %899 = vdwg.mxu0
    %v900 = vsel %vm672, %v206, 0
    %902 = vmatprep.subr.mxu0 0.0
    %903 = vmatpush1.msra.mxu0 0.0
    %904 = vmatprep.subr.mxu0 0.0
    %905 = vmatpush1.msra.mxu0 0.0
    %906 = vmatprep.subr.mxu0 0.0
    %907 = vmatpush1.msra.mxu0 0.0
    %908 = vmatprep.subr.mxu0 0.0
    %909 = vmatpush1.msra.mxu0 0.0
    %910 = vmatprep.subr.mxu0 0.0
    %911 = vmatpush1.msra.mxu0 0.0
    %912 = vmatprep.subr.mxu0 0.0
    %913 = vmatpush1.msra.mxu0 0.0
    %914 = vmatprep.subr.mxu0 0.0
    %915 = vmatpush1.msra.mxu0 0.0
    %916 = vmatprep.subr.mxu0 0.0
    %917 = vmatpush1.msra.mxu0 0.0
    %918 = vmatprep.subr.mxu0 0.0
    %919 = vmatpush1.msra.mxu0 0.0
    %920 = vmatprep.subr.mxu0 0.0
    %921 = vmatpush1.msra.mxu0 0.0
    %922 = vmatprep.subr.mxu0 0.0
    %923 = vmatpush1.msra.mxu0 0.0
    %924 = vmatprep.subr.mxu0 0.0
    %925 = vmatpush1.msra.mxu0 0.0
    %926 = vmatprep.subr.mxu0 0.0
    %927 = vmatpush1.msra.mxu0 %v47
    %928 = vmatprep.subr.mxu0 0.0
    %929 = vmatpush1.msra.mxu0 %v46
    %930 = vmatprep.subr.mxu0 0.0
    %931 = vmatpush1.msra.mxu0 %v45
    %932 = vmatprep.subr.mxu0 0.0
    %933 = vmatpush1.msra.mxu0 %v44
    %934 = vmatprep.subr.mxu0 0.0
    %935 = vmatpush2.msra.mxu0 0.0
    %936 = vmatprep.subr.mxu0 0.0
    %937 = vmatpush2.msra.mxu0 0.0
    %938 = vmatprep.subr.mxu0 0.0
    %939 = vmatpush2.msra.mxu0 0.0
    %940 = vmatprep.subr.mxu0 0.0
    %941 = vmatpush2.msra.mxu0 0.0
    %942 = vmatprep.subr.mxu0 0.0
    %943 = vmatpush2.msra.mxu0 0.0
    %944 = vmatprep.subr.mxu0 0.0
    %945 = vmatpush2.msra.mxu0 0.0
    %946 = vmatprep.subr.mxu0 0.0
    %947 = vmatpush2.msra.mxu0 0.0
    %948 = vmatprep.subr.mxu0 0.0
    %949 = vmatpush2.msra.mxu0 0.0
    %950 = vmatprep.subr.mxu0 0.0
    %951 = vmatpush2.msra.mxu0 0.0
    %952 = vmatprep.subr.mxu0 0.0
    %953 = vmatpush2.msra.mxu0 0.0
    %954 = vmatprep.subr.mxu0 0.0
    %955 = vmatpush2.msra.mxu0 0.0
    %956 = vmatprep.subr.mxu0 0.0
    %957 = vmatpush2.msra.mxu0 0.0
    %958 = vmatprep.subr.mxu0 0.0
    %959 = vmatpush2.msra.mxu0 0.0
    %960 = vmatprep.subr.mxu0 0.0
    %961 = vmatpush2.msra.mxu0 0.0
    %962 = vmatprep.subr.mxu0 0.0
    %963 = vmatpush2.msra.mxu0 0.0
    %964 = vmatprep.subr.mxu0 0.0
    %965 = vmatpush2.msra.mxu0 0.0
    %966 = vmatprep.mubr.f32.mxu0 0.0
    %967 = vmatmul.mubr.f32.gmra.mxu0 %v900
    %v968 = vpop.f32.mrf.mxu0
    %v969 = vadd.f32 %v897, %v968
    %v970 = vpop.f32.mrf.mxu0
    %971 = vdwg.mxu0
    %v972 = vadd.f32 %v969, %v821
    %s973 = scalar_lea.vmem [#allocation5], 4
    %974 = vst.msk [vmem:[%s973] sm:$0xf] %vm824, %v972
    %975 = vrot.lane.b32.xlu0 %v514, 96
    %v976 = vpop.permute.xlu0 %975
    %v977 = vsel %vm672, %v976, 0
    %979 = vmatprep.subr.mxu0 0.0
    %980 = vmatpush1.msra.mxu0 0.0
    %981 = vmatprep.subr.mxu0 0.0
    %982 = vmatpush1.msra.mxu0 0.0
    %983 = vmatprep.subr.mxu0 0.0
    %984 = vmatpush1.msra.mxu0 0.0
    %985 = vmatprep.subr.mxu0 0.0
    %986 = vmatpush1.msra.mxu0 0.0
    %987 = vmatprep.subr.mxu0 0.0
    %988 = vmatpush1.msra.mxu0 0.0
    %989 = vmatprep.subr.mxu0 0.0
    %990 = vmatpush1.msra.mxu0 0.0
    %991 = vmatprep.subr.mxu0 0.0
    %992 = vmatpush1.msra.mxu0 0.0
    %993 = vmatprep.subr.mxu0 0.0
    %994 = vmatpush1.msra.mxu0 0.0
    %995 = vmatprep.subr.mxu0 0.0
    %996 = vmatpush1.msra.mxu0 0.0
    %997 = vmatprep.subr.mxu0 0.0
    %998 = vmatpush1.msra.mxu0 0.0
    %999 = vmatprep.subr.mxu0 0.0
    %1000 = vmatpush1.msra.mxu0 0.0
    %1001 = vmatprep.subr.mxu0 0.0
    %1002 = vmatpush1.msra.mxu0 0.0
    %1003 = vmatprep.subr.mxu0 0.0
    %1004 = vmatpush1.msra.mxu0 %v51
    %1005 = vmatprep.subr.mxu0 0.0
    %1006 = vmatpush1.msra.mxu0 %v50
    %1007 = vmatprep.subr.mxu0 0.0
    %1008 = vmatpush1.msra.mxu0 %v49
    %1009 = vmatprep.subr.mxu0 0.0
    %1010 = vmatpush1.msra.mxu0 %v48
    %1011 = vmatprep.subr.mxu0 0.0
    %1012 = vmatpush2.msra.mxu0 0.0
    %1013 = vmatprep.subr.mxu0 0.0
    %1014 = vmatpush2.msra.mxu0 0.0
    %1015 = vmatprep.subr.mxu0 0.0
    %1016 = vmatpush2.msra.mxu0 0.0
    %1017 = vmatprep.subr.mxu0 0.0
    %1018 = vmatpush2.msra.mxu0 0.0
    %1019 = vmatprep.subr.mxu0 0.0
    %1020 = vmatpush2.msra.mxu0 0.0
    %1021 = vmatprep.subr.mxu0 0.0
    %1022 = vmatpush2.msra.mxu0 0.0
    %1023 = vmatprep.subr.mxu0 0.0
    %1024 = vmatpush2.msra.mxu0 0.0
    %1025 = vmatprep.subr.mxu0 0.0
    %1026 = vmatpush2.msra.mxu0 0.0
    %1027 = vmatprep.subr.mxu0 0.0
    %1028 = vmatpush2.msra.mxu0 0.0
    %1029 = vmatprep.subr.mxu0 0.0
    %1030 = vmatpush2.msra.mxu0 0.0
    %1031 = vmatprep.subr.mxu0 0.0
    %1032 = vmatpush2.msra.mxu0 0.0
    %1033 = vmatprep.subr.mxu0 0.0
    %1034 = vmatpush2.msra.mxu0 0.0
    %1035 = vmatprep.subr.mxu0 0.0
    %1036 = vmatpush2.msra.mxu0 0.0
    %1037 = vmatprep.subr.mxu0 0.0
    %1038 = vmatpush2.msra.mxu0 0.0
    %1039 = vmatprep.subr.mxu0 0.0
    %1040 = vmatpush2.msra.mxu0 0.0
    %1041 = vmatprep.subr.mxu0 0.0
    %1042 = vmatpush2.msra.mxu0 0.0
    %1043 = vmatprep.mubr.f32.mxu0 0.0
    %1044 = vmatmul.mubr.f32.gmra.mxu0 %v977
    %v1045 = vpop.f32.mrf.mxu0
    %v1046 = vadd.f32 0.0, %v1045
    %v1047 = vpop.f32.mrf.mxu0
    %1048 = vdwg.mxu0
    %v1049 = vsel %vm672, %v283, 0
    %1051 = vmatprep.subr.mxu0 0.0
    %1052 = vmatpush1.msra.mxu0 0.0
    %1053 = vmatprep.subr.mxu0 0.0
    %1054 = vmatpush1.msra.mxu0 0.0
    %1055 = vmatprep.subr.mxu0 0.0
    %1056 = vmatpush1.msra.mxu0 0.0
    %1057 = vmatprep.subr.mxu0 0.0
    %1058 = vmatpush1.msra.mxu0 0.0
    %1059 = vmatprep.subr.mxu0 0.0
    %1060 = vmatpush1.msra.mxu0 0.0
    %1061 = vmatprep.subr.mxu0 0.0
    %1062 = vmatpush1.msra.mxu0 0.0
    %1063 = vmatprep.subr.mxu0 0.0
    %1064 = vmatpush1.msra.mxu0 0.0
    %1065 = vmatprep.subr.mxu0 0.0
    %1066 = vmatpush1.msra.mxu0 0.0
    %1067 = vmatprep.subr.mxu0 0.0
    %1068 = vmatpush1.msra.mxu0 0.0
    %1069 = vmatprep.subr.mxu0 0.0
    %1070 = vmatpush1.msra.mxu0 0.0
    %1071 = vmatprep.subr.mxu0 0.0
    %1072 = vmatpush1.msra.mxu0 0.0
    %1073 = vmatprep.subr.mxu0 0.0
    %1074 = vmatpush1.msra.mxu0 0.0
    %1075 = vmatprep.subr.mxu0 0.0
    %1076 = vmatpush1.msra.mxu0 %v47
    %1077 = vmatprep.subr.mxu0 0.0
    %1078 = vmatpush1.msra.mxu0 %v46
    %1079 = vmatprep.subr.mxu0 0.0
    %1080 = vmatpush1.msra.mxu0 %v45
    %1081 = vmatprep.subr.mxu0 0.0
    %1082 = vmatpush1.msra.mxu0 %v44
    %1083 = vmatprep.subr.mxu0 0.0
    %1084 = vmatpush2.msra.mxu0 0.0
    %1085 = vmatprep.subr.mxu0 0.0
    %1086 = vmatpush2.msra.mxu0 0.0
    %1087 = vmatprep.subr.mxu0 0.0
    %1088 = vmatpush2.msra.mxu0 0.0
    %1089 = vmatprep.subr.mxu0 0.0
    %1090 = vmatpush2.msra.mxu0 0.0
    %1091 = vmatprep.subr.mxu0 0.0
    %1092 = vmatpush2.msra.mxu0 0.0
    %1093 = vmatprep.subr.mxu0 0.0
    %1094 = vmatpush2.msra.mxu0 0.0
    %1095 = vmatprep.subr.mxu0 0.0
    %1096 = vmatpush2.msra.mxu0 0.0
    %1097 = vmatprep.subr.mxu0 0.0
    %1098 = vmatpush2.msra.mxu0 0.0
    %1099 = vmatprep.subr.mxu0 0.0
    %1100 = vmatpush2.msra.mxu0 0.0
    %1101 = vmatprep.subr.mxu0 0.0
    %1102 = vmatpush2.msra.mxu0 0.0
    %1103 = vmatprep.subr.mxu0 0.0
    %1104 = vmatpush2.msra.mxu0 0.0
    %1105 = vmatprep.subr.mxu0 0.0
    %1106 = vmatpush2.msra.mxu0 0.0
    %1107 = vmatprep.subr.mxu0 0.0
    %1108 = vmatpush2.msra.mxu0 0.0
    %1109 = vmatprep.subr.mxu0 0.0
    %1110 = vmatpush2.msra.mxu0 0.0
    %1111 = vmatprep.subr.mxu0 0.0
    %1112 = vmatpush2.msra.mxu0 0.0
    %1113 = vmatprep.subr.mxu0 0.0
    %1114 = vmatpush2.msra.mxu0 0.0
    %1115 = vmatprep.mubr.f32.mxu0 0.0
    %1116 = vmatmul.mubr.f32.gmra.mxu0 %v1049
    %v1117 = vpop.f32.mrf.mxu0
    %v1118 = vadd.f32 %v1046, %v1117
    %v1119 = vpop.f32.mrf.mxu0
    %1120 = vdwg.mxu0
    %v1121 = vadd.f32 %v1118, %v821
    %s1122 = scalar_lea.vmem [#allocation5], 8
    %1123 = vst.msk [vmem:[%s1122] sm:$0xf] %vm824, %v1121
    %1124 = vrot.lane.b32.xlu0 %v437, 96
    %v1125 = vpop.permute.xlu0 %1124
    %v1126 = vsel %vm672, %v1125, 0
    %1128 = vmatprep.subr.mxu0 0.0
    %1129 = vmatpush1.msra.mxu0 0.0
    %1130 = vmatprep.subr.mxu0 0.0
    %1131 = vmatpush1.msra.mxu0 0.0
    %1132 = vmatprep.subr.mxu0 0.0
    %1133 = vmatpush1.msra.mxu0 0.0
    %1134 = vmatprep.subr.mxu0 0.0
    %1135 = vmatpush1.msra.mxu0 0.0
    %1136 = vmatprep.subr.mxu0 0.0
    %1137 = vmatpush1.msra.mxu0 0.0
    %1138 = vmatprep.subr.mxu0 0.0
    %1139 = vmatpush1.msra.mxu0 0.0
    %1140 = vmatprep.subr.mxu0 0.0
    %1141 = vmatpush1.msra.mxu0 0.0
    %1142 = vmatprep.subr.mxu0 0.0
    %1143 = vmatpush1.msra.mxu0 0.0
    %1144 = vmatprep.subr.mxu0 0.0
    %1145 = vmatpush1.msra.mxu0 0.0
    %1146 = vmatprep.subr.mxu0 0.0
    %1147 = vmatpush1.msra.mxu0 0.0
    %1148 = vmatprep.subr.mxu0 0.0
    %1149 = vmatpush1.msra.mxu0 0.0
    %1150 = vmatprep.subr.mxu0 0.0
    %1151 = vmatpush1.msra.mxu0 0.0
    %1152 = vmatprep.subr.mxu0 0.0
    %1153 = vmatpush1.msra.mxu0 %v51
    %1154 = vmatprep.subr.mxu0 0.0
    %1155 = vmatpush1.msra.mxu0 %v50
    %1156 = vmatprep.subr.mxu0 0.0
    %1157 = vmatpush1.msra.mxu0 %v49
    %1158 = vmatprep.subr.mxu0 0.0
    %1159 = vmatpush1.msra.mxu0 %v48
    %1160 = vmatprep.subr.mxu0 0.0
    %1161 = vmatpush2.msra.mxu0 0.0
    %1162 = vmatprep.subr.mxu0 0.0
    %1163 = vmatpush2.msra.mxu0 0.0
    %1164 = vmatprep.subr.mxu0 0.0
    %1165 = vmatpush2.msra.mxu0 0.0
    %1166 = vmatprep.subr.mxu0 0.0
    %1167 = vmatpush2.msra.mxu0 0.0
    %1168 = vmatprep.subr.mxu0 0.0
    %1169 = vmatpush2.msra.mxu0 0.0
    %1170 = vmatprep.subr.mxu0 0.0
    %1171 = vmatpush2.msra.mxu0 0.0
    %1172 = vmatprep.subr.mxu0 0.0
    %1173 = vmatpush2.msra.mxu0 0.0
    %1174 = vmatprep.subr.mxu0 0.0
    %1175 = vmatpush2.msra.mxu0 0.0
    %1176 = vmatprep.subr.mxu0 0.0
    %1177 = vmatpush2.msra.mxu0 0.0
    %1178 = vmatprep.subr.mxu0 0.0
    %1179 = vmatpush2.msra.mxu0 0.0
    %1180 = vmatprep.subr.mxu0 0.0
    %1181 = vmatpush2.msra.mxu0 0.0
    %1182 = vmatprep.subr.mxu0 0.0
    %1183 = vmatpush2.msra.mxu0 0.0
    %1184 = vmatprep.subr.mxu0 0.0
    %1185 = vmatpush2.msra.mxu0 0.0
    %1186 = vmatprep.subr.mxu0 0.0
    %1187 = vmatpush2.msra.mxu0 0.0
    %1188 = vmatprep.subr.mxu0 0.0
    %1189 = vmatpush2.msra.mxu0 0.0
    %1190 = vmatprep.subr.mxu0 0.0
    %1191 = vmatpush2.msra.mxu0 0.0
    %1192 = vmatprep.mubr.f32.mxu0 0.0
    %1193 = vmatmul.mubr.f32.gmra.mxu0 %v1126
    %v1194 = vpop.f32.mrf.mxu0
    %v1195 = vadd.f32 0.0, %v1194
    %v1196 = vpop.f32.mrf.mxu0
    %1197 = vdwg.mxu0
    %v1198 = vsel %vm672, %v360, 0
    %1200 = vmatprep.subr.mxu0 0.0
    %1201 = vmatpush1.msra.mxu0 0.0
    %1202 = vmatprep.subr.mxu0 0.0
    %1203 = vmatpush1.msra.mxu0 0.0
    %1204 = vmatprep.subr.mxu0 0.0
    %1205 = vmatpush1.msra.mxu0 0.0
    %1206 = vmatprep.subr.mxu0 0.0
    %1207 = vmatpush1.msra.mxu0 0.0
    %1208 = vmatprep.subr.mxu0 0.0
    %1209 = vmatpush1.msra.mxu0 0.0
    %1210 = vmatprep.subr.mxu0 0.0
    %1211 = vmatpush1.msra.mxu0 0.0
    %1212 = vmatprep.subr.mxu0 0.0
    %1213 = vmatpush1.msra.mxu0 0.0
    %1214 = vmatprep.subr.mxu0 0.0
    %1215 = vmatpush1.msra.mxu0 0.0
    %1216 = vmatprep.subr.mxu0 0.0
    %1217 = vmatpush1.msra.mxu0 0.0
    %1218 = vmatprep.subr.mxu0 0.0
    %1219 = vmatpush1.msra.mxu0 0.0
    %1220 = vmatprep.subr.mxu0 0.0
    %1221 = vmatpush1.msra.mxu0 0.0
    %1222 = vmatprep.subr.mxu0 0.0
    %1223 = vmatpush1.msra.mxu0 0.0
    %1224 = vmatprep.subr.mxu0 0.0
    %1225 = vmatpush1.msra.mxu0 %v47
    %1226 = vmatprep.subr.mxu0 0.0
    %1227 = vmatpush1.msra.mxu0 %v46
    %1228 = vmatprep.subr.mxu0 0.0
    %1229 = vmatpush1.msra.mxu0 %v45
    %1230 = vmatprep.subr.mxu0 0.0
    %1231 = vmatpush1.msra.mxu0 %v44
    %1232 = vmatprep.subr.mxu0 0.0
    %1233 = vmatpush2.msra.mxu0 0.0
    %1234 = vmatprep.subr.mxu0 0.0
    %1235 = vmatpush2.msra.mxu0 0.0
    %1236 = vmatprep.subr.mxu0 0.0
    %1237 = vmatpush2.msra.mxu0 0.0
    %1238 = vmatprep.subr.mxu0 0.0
    %1239 = vmatpush2.msra.mxu0 0.0
    %1240 = vmatprep.subr.mxu0 0.0
    %1241 = vmatpush2.msra.mxu0 0.0
    %1242 = vmatprep.subr.mxu0 0.0
    %1243 = vmatpush2.msra.mxu0 0.0
    %1244 = vmatprep.subr.mxu0 0.0
    %1245 = vmatpush2.msra.mxu0 0.0
    %1246 = vmatprep.subr.mxu0 0.0
    %1247 = vmatpush2.msra.mxu0 0.0
    %1248 = vmatprep.subr.mxu0 0.0
    %1249 = vmatpush2.msra.mxu0 0.0
    %1250 = vmatprep.subr.mxu0 0.0
    %1251 = vmatpush2.msra.mxu0 0.0
    %1252 = vmatprep.subr.mxu0 0.0
    %1253 = vmatpush2.msra.mxu0 0.0
    %1254 = vmatprep.subr.mxu0 0.0
    %1255 = vmatpush2.msra.mxu0 0.0
    %1256 = vmatprep.subr.mxu0 0.0
    %1257 = vmatpush2.msra.mxu0 0.0
    %1258 = vmatprep.subr.mxu0 0.0
    %1259 = vmatpush2.msra.mxu0 0.0
    %1260 = vmatprep.subr.mxu0 0.0
    %1261 = vmatpush2.msra.mxu0 0.0
    %1262 = vmatprep.subr.mxu0 0.0
    %1263 = vmatpush2.msra.mxu0 0.0
    %1264 = vmatprep.mubr.f32.mxu0 0.0
    %1265 = vmatmul.mubr.f32.gmra.mxu0 %v1198
    %v1266 = vpop.f32.mrf.mxu0
    %v1267 = vadd.f32 %v1195, %v1266
    %v1268 = vpop.f32.mrf.mxu0
    %1269 = vdwg.mxu0
    %v1270 = vadd.f32 %v1267, %v821
    %s1271 = scalar_lea.vmem [#allocation5], 12
    %1272 = vst.msk [vmem:[%s1271] sm:$0xf] %vm824, %v1270
    %1273 = vrot.lane.b32.xlu0 %v360, 96
    %v1274 = vpop.permute.xlu0 %1273
    %v1275 = vsel %vm672, %v1274, 0
    %1277 = vmatprep.subr.mxu0 0.0
    %1278 = vmatpush1.msra.mxu0 0.0
    %1279 = vmatprep.subr.mxu0 0.0
    %1280 = vmatpush1.msra.mxu0 0.0
    %1281 = vmatprep.subr.mxu0 0.0
    %1282 = vmatpush1.msra.mxu0 0.0
    %1283 = vmatprep.subr.mxu0 0.0
    %1284 = vmatpush1.msra.mxu0 0.0
    %1285 = vmatprep.subr.mxu0 0.0
    %1286 = vmatpush1.msra.mxu0 0.0
    %1287 = vmatprep.subr.mxu0 0.0
    %1288 = vmatpush1.msra.mxu0 0.0
    %1289 = vmatprep.subr.mxu0 0.0
    %1290 = vmatpush1.msra.mxu0 0.0
    %1291 = vmatprep.subr.mxu0 0.0
    %1292 = vmatpush1.msra.mxu0 0.0
    %1293 = vmatprep.subr.mxu0 0.0
    %1294 = vmatpush1.msra.mxu0 0.0
    %1295 = vmatprep.subr.mxu0 0.0
    %1296 = vmatpush1.msra.mxu0 0.0
    %1297 = vmatprep.subr.mxu0 0.0
    %1298 = vmatpush1.msra.mxu0 0.0
    %1299 = vmatprep.subr.mxu0 0.0
    %1300 = vmatpush1.msra.mxu0 0.0
    %1301 = vmatprep.subr.mxu0 0.0
    %1302 = vmatpush1.msra.mxu0 %v51
    %1303 = vmatprep.subr.mxu0 0.0
    %1304 = vmatpush1.msra.mxu0 %v50
    %1305 = vmatprep.subr.mxu0 0.0
    %1306 = vmatpush1.msra.mxu0 %v49
    %1307 = vmatprep.subr.mxu0 0.0
    %1308 = vmatpush1.msra.mxu0 %v48
    %1309 = vmatprep.subr.mxu0 0.0
    %1310 = vmatpush2.msra.mxu0 0.0
    %1311 = vmatprep.subr.mxu0 0.0
    %1312 = vmatpush2.msra.mxu0 0.0
    %1313 = vmatprep.subr.mxu0 0.0
    %1314 = vmatpush2.msra.mxu0 0.0
    %1315 = vmatprep.subr.mxu0 0.0
    %1316 = vmatpush2.msra.mxu0 0.0
    %1317 = vmatprep.subr.mxu0 0.0
    %1318 = vmatpush2.msra.mxu0 0.0
    %1319 = vmatprep.subr.mxu0 0.0
    %1320 = vmatpush2.msra.mxu0 0.0
    %1321 = vmatprep.subr.mxu0 0.0
    %1322 = vmatpush2.msra.mxu0 0.0
    %1323 = vmatprep.subr.mxu0 0.0
    %1324 = vmatpush2.msra.mxu0 0.0
    %1325 = vmatprep.subr.mxu0 0.0
    %1326 = vmatpush2.msra.mxu0 0.0
    %1327 = vmatprep.subr.mxu0 0.0
    %1328 = vmatpush2.msra.mxu0 0.0
    %1329 = vmatprep.subr.mxu0 0.0
    %1330 = vmatpush2.msra.mxu0 0.0
    %1331 = vmatprep.subr.mxu0 0.0
    %1332 = vmatpush2.msra.mxu0 0.0
    %1333 = vmatprep.subr.mxu0 0.0
    %1334 = vmatpush2.msra.mxu0 0.0
    %1335 = vmatprep.subr.mxu0 0.0
    %1336 = vmatpush2.msra.mxu0 0.0
    %1337 = vmatprep.subr.mxu0 0.0
    %1338 = vmatpush2.msra.mxu0 0.0
    %1339 = vmatprep.subr.mxu0 0.0
    %1340 = vmatpush2.msra.mxu0 0.0
    %1341 = vmatprep.mubr.f32.mxu0 0.0
    %1342 = vmatmul.mubr.f32.gmra.mxu0 %v1275
    %v1343 = vpop.f32.mrf.mxu0
    %v1344 = vadd.f32 0.0, %v1343
    %v1345 = vpop.f32.mrf.mxu0
    %1346 = vdwg.mxu0
    %v1347 = vsel %vm672, %v437, 0
    %1349 = vmatprep.subr.mxu0 0.0
    %1350 = vmatpush1.msra.mxu0 0.0
    %1351 = vmatprep.subr.mxu0 0.0
    %1352 = vmatpush1.msra.mxu0 0.0
    %1353 = vmatprep.subr.mxu0 0.0
    %1354 = vmatpush1.msra.mxu0 0.0
    %1355 = vmatprep.subr.mxu0 0.0
    %1356 = vmatpush1.msra.mxu0 0.0
    %1357 = vmatprep.subr.mxu0 0.0
    %1358 = vmatpush1.msra.mxu0 0.0
    %1359 = vmatprep.subr.mxu0 0.0
    %1360 = vmatpush1.msra.mxu0 0.0
    %1361 = vmatprep.subr.mxu0 0.0
    %1362 = vmatpush1.msra.mxu0 0.0
    %1363 = vmatprep.subr.mxu0 0.0
    %1364 = vmatpush1.msra.mxu0 0.0
    %1365 = vmatprep.subr.mxu0 0.0
    %1366 = vmatpush1.msra.mxu0 0.0
    %1367 = vmatprep.subr.mxu0 0.0
    %1368 = vmatpush1.msra.mxu0 0.0
    %1369 = vmatprep.subr.mxu0 0.0
    %1370 = vmatpush1.msra.mxu0 0.0
    %1371 = vmatprep.subr.mxu0 0.0
    %1372 = vmatpush1.msra.mxu0 0.0
    %1373 = vmatprep.subr.mxu0 0.0
    %1374 = vmatpush1.msra.mxu0 %v47
    %1375 = vmatprep.subr.mxu0 0.0
    %1376 = vmatpush1.msra.mxu0 %v46
    %1377 = vmatprep.subr.mxu0 0.0
    %1378 = vmatpush1.msra.mxu0 %v45
    %1379 = vmatprep.subr.mxu0 0.0
    %1380 = vmatpush1.msra.mxu0 %v44
    %1381 = vmatprep.subr.mxu0 0.0
    %1382 = vmatpush2.msra.mxu0 0.0
    %1383 = vmatprep.subr.mxu0 0.0
    %1384 = vmatpush2.msra.mxu0 0.0
    %1385 = vmatprep.subr.mxu0 0.0
    %1386 = vmatpush2.msra.mxu0 0.0
    %1387 = vmatprep.subr.mxu0 0.0
    %1388 = vmatpush2.msra.mxu0 0.0
    %1389 = vmatprep.subr.mxu0 0.0
    %1390 = vmatpush2.msra.mxu0 0.0
    %1391 = vmatprep.subr.mxu0 0.0
    %1392 = vmatpush2.msra.mxu0 0.0
    %1393 = vmatprep.subr.mxu0 0.0
    %1394 = vmatpush2.msra.mxu0 0.0
    %1395 = vmatprep.subr.mxu0 0.0
    %1396 = vmatpush2.msra.mxu0 0.0
    %1397 = vmatprep.subr.mxu0 0.0
    %1398 = vmatpush2.msra.mxu0 0.0
    %1399 = vmatprep.subr.mxu0 0.0
    %1400 = vmatpush2.msra.mxu0 0.0
    %1401 = vmatprep.subr.mxu0 0.0
    %1402 = vmatpush2.msra.mxu0 0.0
    %1403 = vmatprep.subr.mxu0 0.0
    %1404 = vmatpush2.msra.mxu0 0.0
    %1405 = vmatprep.subr.mxu0 0.0
    %1406 = vmatpush2.msra.mxu0 0.0
    %1407 = vmatprep.subr.mxu0 0.0
    %1408 = vmatpush2.msra.mxu0 0.0
    %1409 = vmatprep.subr.mxu0 0.0
    %1410 = vmatpush2.msra.mxu0 0.0
    %1411 = vmatprep.subr.mxu0 0.0
    %1412 = vmatpush2.msra.mxu0 0.0
    %1413 = vmatprep.mubr.f32.mxu0 0.0
    %1414 = vmatmul.mubr.f32.gmra.mxu0 %v1347
    %v1415 = vpop.f32.mrf.mxu0
    %v1416 = vadd.f32 %v1344, %v1415
    %v1417 = vpop.f32.mrf.mxu0
    %1418 = vdwg.mxu0
    %v1419 = vadd.f32 %v1416, %v821
    %s1420 = scalar_lea.vmem [#allocation5], 16
    %1421 = vst.msk [vmem:[%s1420] sm:$0xf] %vm824, %v1419
    %1422 = vrot.lane.b32.xlu0 %v283, 96
    %v1423 = vpop.permute.xlu0 %1422
    %v1424 = vsel %vm672, %v1423, 0
    %1426 = vmatprep.subr.mxu0 0.0
    %1427 = vmatpush1.msra.mxu0 0.0
    %1428 = vmatprep.subr.mxu0 0.0
    %1429 = vmatpush1.msra.mxu0 0.0
    %1430 = vmatprep.subr.mxu0 0.0
    %1431 = vmatpush1.msra.mxu0 0.0
    %1432 = vmatprep.subr.mxu0 0.0
    %1433 = vmatpush1.msra.mxu0 0.0
    %1434 = vmatprep.subr.mxu0 0.0
    %1435 = vmatpush1.msra.mxu0 0.0
    %1436 = vmatprep.subr.mxu0 0.0
    %1437 = vmatpush1.msra.mxu0 0.0
    %1438 = vmatprep.subr.mxu0 0.0
    %1439 = vmatpush1.msra.mxu0 0.0
    %1440 = vmatprep.subr.mxu0 0.0
    %1441 = vmatpush1.msra.mxu0 0.0
    %1442 = vmatprep.subr.mxu0 0.0
    %1443 = vmatpush1.msra.mxu0 0.0
    %1444 = vmatprep.subr.mxu0 0.0
    %1445 = vmatpush1.msra.mxu0 0.0
    %1446 = vmatprep.subr.mxu0 0.0
    %1447 = vmatpush1.msra.mxu0 0.0
    %1448 = vmatprep.subr.mxu0 0.0
    %1449 = vmatpush1.msra.mxu0 0.0
    %1450 = vmatprep.subr.mxu0 0.0
    %1451 = vmatpush1.msra.mxu0 %v51
    %1452 = vmatprep.subr.mxu0 0.0
    %1453 = vmatpush1.msra.mxu0 %v50
    %1454 = vmatprep.subr.mxu0 0.0
    %1455 = vmatpush1.msra.mxu0 %v49
    %1456 = vmatprep.subr.mxu0 0.0
    %1457 = vmatpush1.msra.mxu0 %v48
    %1458 = vmatprep.subr.mxu0 0.0
    %1459 = vmatpush2.msra.mxu0 0.0
    %1460 = vmatprep.subr.mxu0 0.0
    %1461 = vmatpush2.msra.mxu0 0.0
    %1462 = vmatprep.subr.mxu0 0.0
    %1463 = vmatpush2.msra.mxu0 0.0
    %1464 = vmatprep.subr.mxu0 0.0
    %1465 = vmatpush2.msra.mxu0 0.0
    %1466 = vmatprep.subr.mxu0 0.0
    %1467 = vmatpush2.msra.mxu0 0.0
    %1468 = vmatprep.subr.mxu0 0.0
    %1469 = vmatpush2.msra.mxu0 0.0
    %1470 = vmatprep.subr.mxu0 0.0
    %1471 = vmatpush2.msra.mxu0 0.0
    %1472 = vmatprep.subr.mxu0 0.0
    %1473 = vmatpush2.msra.mxu0 0.0
    %1474 = vmatprep.subr.mxu0 0.0
    %1475 = vmatpush2.msra.mxu0 0.0
    %1476 = vmatprep.subr.mxu0 0.0
    %1477 = vmatpush2.msra.mxu0 0.0
    %1478 = vmatprep.subr.mxu0 0.0
    %1479 = vmatpush2.msra.mxu0 0.0
    %1480 = vmatprep.subr.mxu0 0.0
    %1481 = vmatpush2.msra.mxu0 0.0
    %1482 = vmatprep.subr.mxu0 0.0
    %1483 = vmatpush2.msra.mxu0 0.0
    %1484 = vmatprep.subr.mxu0 0.0
    %1485 = vmatpush2.msra.mxu0 0.0
    %1486 = vmatprep.subr.mxu0 0.0
    %1487 = vmatpush2.msra.mxu0 0.0
    %1488 = vmatprep.subr.mxu0 0.0
    %1489 = vmatpush2.msra.mxu0 0.0
    %1490 = vmatprep.mubr.f32.mxu0 0.0
    %1491 = vmatmul.mubr.f32.gmra.mxu0 %v1424
    %v1492 = vpop.f32.mrf.mxu0
    %v1493 = vadd.f32 0.0, %v1492
    %v1494 = vpop.f32.mrf.mxu0
    %1495 = vdwg.mxu0
    %v1496 = vsel %vm672, %v514, 0
    %1498 = vmatprep.subr.mxu0 0.0
    %1499 = vmatpush1.msra.mxu0 0.0
    %1500 = vmatprep.subr.mxu0 0.0
    %1501 = vmatpush1.msra.mxu0 0.0
    %1502 = vmatprep.subr.mxu0 0.0
    %1503 = vmatpush1.msra.mxu0 0.0
    %1504 = vmatprep.subr.mxu0 0.0
    %1505 = vmatpush1.msra.mxu0 0.0
    %1506 = vmatprep.subr.mxu0 0.0
    %1507 = vmatpush1.msra.mxu0 0.0
    %1508 = vmatprep.subr.mxu0 0.0
    %1509 = vmatpush1.msra.mxu0 0.0
    %1510 = vmatprep.subr.mxu0 0.0
    %1511 = vmatpush1.msra.mxu0 0.0
    %1512 = vmatprep.subr.mxu0 0.0
    %1513 = vmatpush1.msra.mxu0 0.0
    %1514 = vmatprep.subr.mxu0 0.0
    %1515 = vmatpush1.msra.mxu0 0.0
    %1516 = vmatprep.subr.mxu0 0.0
    %1517 = vmatpush1.msra.mxu0 0.0
    %1518 = vmatprep.subr.mxu0 0.0
    %1519 = vmatpush1.msra.mxu0 0.0
    %1520 = vmatprep.subr.mxu0 0.0
    %1521 = vmatpush1.msra.mxu0 0.0
    %1522 = vmatprep.subr.mxu0 0.0
    %1523 = vmatpush1.msra.mxu0 %v47
    %1524 = vmatprep.subr.mxu0 0.0
    %1525 = vmatpush1.msra.mxu0 %v46
    %1526 = vmatprep.subr.mxu0 0.0
    %1527 = vmatpush1.msra.mxu0 %v45
    %1528 = vmatprep.subr.mxu0 0.0
    %1529 = vmatpush1.msra.mxu0 %v44
    %1530 = vmatprep.subr.mxu0 0.0
    %1531 = vmatpush2.msra.mxu0 0.0
    %1532 = vmatprep.subr.mxu0 0.0
    %1533 = vmatpush2.msra.mxu0 0.0
    %1534 = vmatprep.subr.mxu0 0.0
    %1535 = vmatpush2.msra.mxu0 0.0
    %1536 = vmatprep.subr.mxu0 0.0
    %1537 = vmatpush2.msra.mxu0 0.0
    %1538 = vmatprep.subr.mxu0 0.0
    %1539 = vmatpush2.msra.mxu0 0.0
    %1540 = vmatprep.subr.mxu0 0.0
    %1541 = vmatpush2.msra.mxu0 0.0
    %1542 = vmatprep.subr.mxu0 0.0
    %1543 = vmatpush2.msra.mxu0 0.0
    %1544 = vmatprep.subr.mxu0 0.0
    %1545 = vmatpush2.msra.mxu0 0.0
    %1546 = vmatprep.subr.mxu0 0.0
    %1547 = vmatpush2.msra.mxu0 0.0
    %1548 = vmatprep.subr.mxu0 0.0
    %1549 = vmatpush2.msra.mxu0 0.0
    %1550 = vmatprep.subr.mxu0 0.0
    %1551 = vmatpush2.msra.mxu0 0.0
    %1552 = vmatprep.subr.mxu0 0.0
    %1553 = vmatpush2.msra.mxu0 0.0
    %1554 = vmatprep.subr.mxu0 0.0
    %1555 = vmatpush2.msra.mxu0 0.0
    %1556 = vmatprep.subr.mxu0 0.0
    %1557 = vmatpush2.msra.mxu0 0.0
    %1558 = vmatprep.subr.mxu0 0.0
    %1559 = vmatpush2.msra.mxu0 0.0
    %1560 = vmatprep.subr.mxu0 0.0
    %1561 = vmatpush2.msra.mxu0 0.0
    %1562 = vmatprep.mubr.f32.mxu0 0.0
    %1563 = vmatmul.mubr.f32.gmra.mxu0 %v1496
    %v1564 = vpop.f32.mrf.mxu0
    %v1565 = vadd.f32 %v1493, %v1564
    %v1566 = vpop.f32.mrf.mxu0
    %1567 = vdwg.mxu0
    %v1568 = vadd.f32 %v1565, %v821
    %s1569 = scalar_lea.vmem [#allocation5], 20
    %1570 = vst.msk [vmem:[%s1569] sm:$0xf] %vm824, %v1568
    %1571 = vrot.lane.b32.xlu0 %v206, 96
    %v1572 = vpop.permute.xlu0 %1571
    %v1573 = vsel %vm672, %v1572, 0
    %1575 = vmatprep.subr.mxu0 0.0
    %1576 = vmatpush1.msra.mxu0 0.0
    %1577 = vmatprep.subr.mxu0 0.0
    %1578 = vmatpush1.msra.mxu0 0.0
    %1579 = vmatprep.subr.mxu0 0.0
    %1580 = vmatpush1.msra.mxu0 0.0
    %1581 = vmatprep.subr.mxu0 0.0
    %1582 = vmatpush1.msra.mxu0 0.0
    %1583 = vmatprep.subr.mxu0 0.0
    %1584 = vmatpush1.msra.mxu0 0.0
    %1585 = vmatprep.subr.mxu0 0.0
    %1586 = vmatpush1.msra.mxu0 0.0
    %1587 = vmatprep.subr.mxu0 0.0
    %1588 = vmatpush1.msra.mxu0 0.0
    %1589 = vmatprep.subr.mxu0 0.0
    %1590 = vmatpush1.msra.mxu0 0.0
    %1591 = vmatprep.subr.mxu0 0.0
    %1592 = vmatpush1.msra.mxu0 0.0
    %1593 = vmatprep.subr.mxu0 0.0
    %1594 = vmatpush1.msra.mxu0 0.0
    %1595 = vmatprep.subr.mxu0 0.0
    %1596 = vmatpush1.msra.mxu0 0.0
    %1597 = vmatprep.subr.mxu0 0.0
    %1598 = vmatpush1.msra.mxu0 0.0
    %1599 = vmatprep.subr.mxu0 0.0
    %1600 = vmatpush1.msra.mxu0 %v51
    %1601 = vmatprep.subr.mxu0 0.0
    %1602 = vmatpush1.msra.mxu0 %v50
    %1603 = vmatprep.subr.mxu0 0.0
    %1604 = vmatpush1.msra.mxu0 %v49
    %1605 = vmatprep.subr.mxu0 0.0
    %1606 = vmatpush1.msra.mxu0 %v48
    %1607 = vmatprep.subr.mxu0 0.0
    %1608 = vmatpush2.msra.mxu0 0.0
    %1609 = vmatprep.subr.mxu0 0.0
    %1610 = vmatpush2.msra.mxu0 0.0
    %1611 = vmatprep.subr.mxu0 0.0
    %1612 = vmatpush2.msra.mxu0 0.0
    %1613 = vmatprep.subr.mxu0 0.0
    %1614 = vmatpush2.msra.mxu0 0.0
    %1615 = vmatprep.subr.mxu0 0.0
    %1616 = vmatpush2.msra.mxu0 0.0
    %1617 = vmatprep.subr.mxu0 0.0
    %1618 = vmatpush2.msra.mxu0 0.0
    %1619 = vmatprep.subr.mxu0 0.0
    %1620 = vmatpush2.msra.mxu0 0.0
    %1621 = vmatprep.subr.mxu0 0.0
    %1622 = vmatpush2.msra.mxu0 0.0
    %1623 = vmatprep.subr.mxu0 0.0
    %1624 = vmatpush2.msra.mxu0 0.0
    %1625 = vmatprep.subr.mxu0 0.0
    %1626 = vmatpush2.msra.mxu0 0.0
    %1627 = vmatprep.subr.mxu0 0.0
    %1628 = vmatpush2.msra.mxu0 0.0
    %1629 = vmatprep.subr.mxu0 0.0
    %1630 = vmatpush2.msra.mxu0 0.0
    %1631 = vmatprep.subr.mxu0 0.0
    %1632 = vmatpush2.msra.mxu0 0.0
    %1633 = vmatprep.subr.mxu0 0.0
    %1634 = vmatpush2.msra.mxu0 0.0
    %1635 = vmatprep.subr.mxu0 0.0
    %1636 = vmatpush2.msra.mxu0 0.0
    %1637 = vmatprep.subr.mxu0 0.0
    %1638 = vmatpush2.msra.mxu0 0.0
    %1639 = vmatprep.mubr.f32.mxu0 0.0
    %1640 = vmatmul.mubr.f32.gmra.mxu0 %v1573
    %v1641 = vpop.f32.mrf.mxu0
    %v1642 = vadd.f32 0.0, %v1641
    %v1643 = vpop.f32.mrf.mxu0
    %1644 = vdwg.mxu0
    %v1645 = vsel %vm672, %v591, 0
    %1647 = vmatprep.subr.mxu0 0.0
    %1648 = vmatpush1.msra.mxu0 0.0
    %1649 = vmatprep.subr.mxu0 0.0
    %1650 = vmatpush1.msra.mxu0 0.0
    %1651 = vmatprep.subr.mxu0 0.0
    %1652 = vmatpush1.msra.mxu0 0.0
    %1653 = vmatprep.subr.mxu0 0.0
    %1654 = vmatpush1.msra.mxu0 0.0
    %1655 = vmatprep.subr.mxu0 0.0
    %1656 = vmatpush1.msra.mxu0 0.0
    %1657 = vmatprep.subr.mxu0 0.0
    %1658 = vmatpush1.msra.mxu0 0.0
    %1659 = vmatprep.subr.mxu0 0.0
    %1660 = vmatpush1.msra.mxu0 0.0
    %1661 = vmatprep.subr.mxu0 0.0
    %1662 = vmatpush1.msra.mxu0 0.0
    %1663 = vmatprep.subr.mxu0 0.0
    %1664 = vmatpush1.msra.mxu0 0.0
    %1665 = vmatprep.subr.mxu0 0.0
    %1666 = vmatpush1.msra.mxu0 0.0
    %1667 = vmatprep.subr.mxu0 0.0
    %1668 = vmatpush1.msra.mxu0 0.0
    %1669 = vmatprep.subr.mxu0 0.0
    %1670 = vmatpush1.msra.mxu0 0.0
    %1671 = vmatprep.subr.mxu0 0.0
    %1672 = vmatpush1.msra.mxu0 %v47
    %1673 = vmatprep.subr.mxu0 0.0
    %1674 = vmatpush1.msra.mxu0 %v46
    %1675 = vmatprep.subr.mxu0 0.0
    %1676 = vmatpush1.msra.mxu0 %v45
    %1677 = vmatprep.subr.mxu0 0.0
    %1678 = vmatpush1.msra.mxu0 %v44
    %1679 = vmatprep.subr.mxu0 0.0
    %1680 = vmatpush2.msra.mxu0 0.0
    %1681 = vmatprep.subr.mxu0 0.0
    %1682 = vmatpush2.msra.mxu0 0.0
    %1683 = vmatprep.subr.mxu0 0.0
    %1684 = vmatpush2.msra.mxu0 0.0
    %1685 = vmatprep.subr.mxu0 0.0
    %1686 = vmatpush2.msra.mxu0 0.0
    %1687 = vmatprep.subr.mxu0 0.0
    %1688 = vmatpush2.msra.mxu0 0.0
    %1689 = vmatprep.subr.mxu0 0.0
    %1690 = vmatpush2.msra.mxu0 0.0
    %1691 = vmatprep.subr.mxu0 0.0
    %1692 = vmatpush2.msra.mxu0 0.0
    %1693 = vmatprep.subr.mxu0 0.0
    %1694 = vmatpush2.msra.mxu0 0.0
    %1695 = vmatprep.subr.mxu0 0.0
    %1696 = vmatpush2.msra.mxu0 0.0
    %1697 = vmatprep.subr.mxu0 0.0
    %1698 = vmatpush2.msra.mxu0 0.0
    %1699 = vmatprep.subr.mxu0 0.0
    %1700 = vmatpush2.msra.mxu0 0.0
    %1701 = vmatprep.subr.mxu0 0.0
    %1702 = vmatpush2.msra.mxu0 0.0
    %1703 = vmatprep.subr.mxu0 0.0
    %1704 = vmatpush2.msra.mxu0 0.0
    %1705 = vmatprep.subr.mxu0 0.0
    %1706 = vmatpush2.msra.mxu0 0.0
    %1707 = vmatprep.subr.mxu0 0.0
    %1708 = vmatpush2.msra.mxu0 0.0
    %1709 = vmatprep.subr.mxu0 0.0
    %1710 = vmatpush2.msra.mxu0 0.0
    %1711 = vmatprep.mubr.f32.mxu0 0.0
    %1712 = vmatmul.mubr.f32.gmra.mxu0 %v1645
    %v1713 = vpop.f32.mrf.mxu0
    %v1714 = vadd.f32 %v1642, %v1713
    %v1715 = vpop.f32.mrf.mxu0
    %1716 = vdwg.mxu0
    %v1717 = vadd.f32 %v1714, %v821
    %s1718 = scalar_lea.vmem [#allocation5], 24
    %1719 = vst.msk [vmem:[%s1718] sm:$0xf] %vm824, %v1717
    %1720 = vrot.lane.b32.xlu0 %v129, 96
    %v1721 = vpop.permute.xlu0 %1720
    %v1722 = vsel %vm672, %v1721, 0
    %1724 = vmatprep.subr.mxu0 0.0
    %1725 = vmatpush1.msra.mxu0 0.0
    %1726 = vmatprep.subr.mxu0 0.0
    %1727 = vmatpush1.msra.mxu0 0.0
    %1728 = vmatprep.subr.mxu0 0.0
    %1729 = vmatpush1.msra.mxu0 0.0
    %1730 = vmatprep.subr.mxu0 0.0
    %1731 = vmatpush1.msra.mxu0 0.0
    %1732 = vmatprep.subr.mxu0 0.0
    %1733 = vmatpush1.msra.mxu0 0.0
    %1734 = vmatprep.subr.mxu0 0.0
    %1735 = vmatpush1.msra.mxu0 0.0
    %1736 = vmatprep.subr.mxu0 0.0
    %1737 = vmatpush1.msra.mxu0 0.0
    %1738 = vmatprep.subr.mxu0 0.0
    %1739 = vmatpush1.msra.mxu0 0.0
    %1740 = vmatprep.subr.mxu0 0.0
    %1741 = vmatpush1.msra.mxu0 0.0
    %1742 = vmatprep.subr.mxu0 0.0
    %1743 = vmatpush1.msra.mxu0 0.0
    %1744 = vmatprep.subr.mxu0 0.0
    %1745 = vmatpush1.msra.mxu0 0.0
    %1746 = vmatprep.subr.mxu0 0.0
    %1747 = vmatpush1.msra.mxu0 0.0
    %1748 = vmatprep.subr.mxu0 0.0
    %1749 = vmatpush1.msra.mxu0 %v51
    %1750 = vmatprep.subr.mxu0 0.0
    %1751 = vmatpush1.msra.mxu0 %v50
    %1752 = vmatprep.subr.mxu0 0.0
    %1753 = vmatpush1.msra.mxu0 %v49
    %1754 = vmatprep.subr.mxu0 0.0
    %1755 = vmatpush1.msra.mxu0 %v48
    %1756 = vmatprep.subr.mxu0 0.0
    %1757 = vmatpush2.msra.mxu0 0.0
    %1758 = vmatprep.subr.mxu0 0.0
    %1759 = vmatpush2.msra.mxu0 0.0
    %1760 = vmatprep.subr.mxu0 0.0
    %1761 = vmatpush2.msra.mxu0 0.0
    %1762 = vmatprep.subr.mxu0 0.0
    %1763 = vmatpush2.msra.mxu0 0.0
    %1764 = vmatprep.subr.mxu0 0.0
    %1765 = vmatpush2.msra.mxu0 0.0
    %1766 = vmatprep.subr.mxu0 0.0
    %1767 = vmatpush2.msra.mxu0 0.0
    %1768 = vmatprep.subr.mxu0 0.0
    %1769 = vmatpush2.msra.mxu0 0.0
    %1770 = vmatprep.subr.mxu0 0.0
    %1771 = vmatpush2.msra.mxu0 0.0
    %1772 = vmatprep.subr.mxu0 0.0
    %1773 = vmatpush2.msra.mxu0 0.0
    %1774 = vmatprep.subr.mxu0 0.0
    %1775 = vmatpush2.msra.mxu0 0.0
    %1776 = vmatprep.subr.mxu0 0.0
    %1777 = vmatpush2.msra.mxu0 0.0
    %1778 = vmatprep.subr.mxu0 0.0
    %1779 = vmatpush2.msra.mxu0 0.0
    %1780 = vmatprep.subr.mxu0 0.0
    %1781 = vmatpush2.msra.mxu0 0.0
    %1782 = vmatprep.subr.mxu0 0.0
    %1783 = vmatpush2.msra.mxu0 0.0
    %1784 = vmatprep.subr.mxu0 0.0
    %1785 = vmatpush2.msra.mxu0 0.0
    %1786 = vmatprep.subr.mxu0 0.0
    %1787 = vmatpush2.msra.mxu0 0.0
    %1788 = vmatprep.mubr.f32.mxu0 0.0
    %1789 = vmatmul.mubr.f32.gmra.mxu0 %v1722
    %v1790 = vpop.f32.mrf.mxu0
    %v1791 = vadd.f32 0.0, %v1790
    %v1792 = vpop.f32.mrf.mxu0
    %1793 = vdwg.mxu0
    %v1794 = vsel %vm672, %v668, 0
    %1796 = vmatprep.subr.mxu0 0.0
    %1797 = vmatpush1.msra.mxu0 0.0
    %1798 = vmatprep.subr.mxu0 0.0
    %1799 = vmatpush1.msra.mxu0 0.0
    %1800 = vmatprep.subr.mxu0 0.0
    %1801 = vmatpush1.msra.mxu0 0.0
    %1802 = vmatprep.subr.mxu0 0.0
    %1803 = vmatpush1.msra.mxu0 0.0
    %1804 = vmatprep.subr.mxu0 0.0
    %1805 = vmatpush1.msra.mxu0 0.0
    %1806 = vmatprep.subr.mxu0 0.0
    %1807 = vmatpush1.msra.mxu0 0.0
    %1808 = vmatprep.subr.mxu0 0.0
    %1809 = vmatpush1.msra.mxu0 0.0
    %1810 = vmatprep.subr.mxu0 0.0
    %1811 = vmatpush1.msra.mxu0 0.0
    %1812 = vmatprep.subr.mxu0 0.0
    %1813 = vmatpush1.msra.mxu0 0.0
    %1814 = vmatprep.subr.mxu0 0.0
    %1815 = vmatpush1.msra.mxu0 0.0
    %1816 = vmatprep.subr.mxu0 0.0
    %1817 = vmatpush1.msra.mxu0 0.0
    %1818 = vmatprep.subr.mxu0 0.0
    %1819 = vmatpush1.msra.mxu0 0.0
    %1820 = vmatprep.subr.mxu0 0.0
    %1821 = vmatpush1.msra.mxu0 %v47
    %1822 = vmatprep.subr.mxu0 0.0
    %1823 = vmatpush1.msra.mxu0 %v46
    %1824 = vmatprep.subr.mxu0 0.0
    %1825 = vmatpush1.msra.mxu0 %v45
    %1826 = vmatprep.subr.mxu0 0.0
    %1827 = vmatpush1.msra.mxu0 %v44
    %1828 = vmatprep.subr.mxu0 0.0
    %1829 = vmatpush2.msra.mxu0 0.0
    %1830 = vmatprep.subr.mxu0 0.0
    %1831 = vmatpush2.msra.mxu0 0.0
    %1832 = vmatprep.subr.mxu0 0.0
    %1833 = vmatpush2.msra.mxu0 0.0
    %1834 = vmatprep.subr.mxu0 0.0
    %1835 = vmatpush2.msra.mxu0 0.0
    %1836 = vmatprep.subr.mxu0 0.0
    %1837 = vmatpush2.msra.mxu0 0.0
    %1838 = vmatprep.subr.mxu0 0.0
    %1839 = vmatpush2.msra.mxu0 0.0
    %1840 = vmatprep.subr.mxu0 0.0
    %1841 = vmatpush2.msra.mxu0 0.0
    %1842 = vmatprep.subr.mxu0 0.0
    %1843 = vmatpush2.msra.mxu0 0.0
    %1844 = vmatprep.subr.mxu0 0.0
    %1845 = vmatpush2.msra.mxu0 0.0
    %1846 = vmatprep.subr.mxu0 0.0
    %1847 = vmatpush2.msra.mxu0 0.0
    %1848 = vmatprep.subr.mxu0 0.0
    %1849 = vmatpush2.msra.mxu0 0.0
    %1850 = vmatprep.subr.mxu0 0.0
    %1851 = vmatpush2.msra.mxu0 0.0
    %1852 = vmatprep.subr.mxu0 0.0
    %1853 = vmatpush2.msra.mxu0 0.0
    %1854 = vmatprep.subr.mxu0 0.0
    %1855 = vmatpush2.msra.mxu0 0.0
    %1856 = vmatprep.subr.mxu0 0.0
    %1857 = vmatpush2.msra.mxu0 0.0
    %1858 = vmatprep.subr.mxu0 0.0
    %1859 = vmatpush2.msra.mxu0 0.0
    %1860 = vmatprep.mubr.f32.mxu0 0.0
    %1861 = vmatmul.mubr.f32.gmra.mxu0 %v1794
    %v1862 = vpop.f32.mrf.mxu0
    %v1863 = vadd.f32 %v1791, %v1862
    %v1864 = vpop.f32.mrf.mxu0
    %1865 = vdwg.mxu0
    %v1866 = vadd.f32 %v1863, %v821
    %s1867 = scalar_lea.vmem [#allocation5], 28
    %1868 = vst.msk [vmem:[%s1867] sm:$0xf] %vm824, %v1866
    %vm1869 = vcmask 257024
    %1870 = vst.msk [vmem:[#allocation6] sm:$0xf] %vm1869, %v668
    %1872 = vst.msk [vmem:[#allocation8] sm:$0xf] %vm1869, %v671
    // Predicated region
    $region22: #{tpu_custom_call.1} parent=1 // pred_check
      _
    $region23: #{tpu_custom_call.1} parent=1 // pred_check_branch
      %1874 = sbr.rel (0) target = $region25
    $region24: #{tpu_custom_call.1} parent=1 // pred_region
      %s1876 = ssub.s32 512, 512
      %1877 = vsyncadd [#allocation4], %s1876
      %s1878 = sshll.u32 [#allocation5], 4
      %s1879 = int_to_ptr.vmem [resolvable:$true] %s1878
      %1884 = dma.vmem_to_hbm [thread:$0]  %s1879, 512, %s4, [#allocation4], 64, 64, 4
    $region25: #{tpu_custom_call.1} parent=1 // pred_fallthru
      _
    // Predicated region
    $region26: #{tpu_custom_call.1} parent=1 // pred_check
      _
    $region27: #{tpu_custom_call.1} parent=1 // pred_check_branch
      %1886 = sbr.rel (0) target = $region29
    $region28: #{tpu_custom_call.1} parent=1 // pred_region
      %s1888 = ssub.s32 64, 64
      %1889 = vsyncadd [#allocation7], %s1888
      %s1891 = sshll.u32 [#allocation6], 4
      %s1892 = int_to_ptr.vmem [resolvable:$true] %s1891
      %1894 = dma.vmem_to_hbm [thread:$0]  %s1892, 64, %s5, [#allocation7]
    $region29: #{tpu_custom_call.1} parent=1 // pred_fallthru
      _
    // Predicated region
    $region30: #{tpu_custom_call.1} parent=1 // pred_check
      _
    $region31: #{tpu_custom_call.1} parent=1 // pred_check_branch
      %1896 = sbr.rel (0) target = $region33
    $region32: #{tpu_custom_call.1} parent=1 // pred_region
      %s1898 = ssub.s32 64, 64
      %1899 = vsyncadd [#allocation7], %s1898
      %s1901 = sshll.u32 [#allocation8], 4
      %s1902 = int_to_ptr.vmem [resolvable:$true] %s1901
      %1904 = dma.vmem_to_hbm [thread:$0]  %s1902, 64, %s6, [#allocation7]
    $region33: #{tpu_custom_call.1} parent=1 // pred_fallthru
      _
    // Predicated region
    $region34: #{tpu_custom_call.1} parent=1 // pred_check
      _
    $region35: #{tpu_custom_call.1} parent=1 // pred_check_branch
      %1906 = sbr.rel (0) target = $region37
    $region36: #{tpu_custom_call.1} parent=1 // pred_region
      %1907 = dma.done [#allocation4], 512
    $region37: #{tpu_custom_call.1} parent=1 // pred_fallthru
      _
    // Predicated region
    $region38: #{tpu_custom_call.1} parent=1 // pred_check
      _
    $region39: #{tpu_custom_call.1} parent=1 // pred_check_branch
      %1909 = sbr.rel (0) target = $region41
    $region40: #{tpu_custom_call.1} parent=1 // pred_region
      %1910 = dma.done [#allocation7], 64
    $region41: #{tpu_custom_call.1} parent=1 // pred_fallthru
      _
    // Predicated region
    $region42: #{tpu_custom_call.1} parent=1 // pred_check
      _
    $region43: #{tpu_custom_call.1} parent=1 // pred_check_branch
      %1912 = sbr.rel (0) target = $region45
    $region44: #{tpu_custom_call.1} parent=1 // pred_region
      %1913 = dma.done [#allocation7], 64
    $region45: #{tpu_custom_call.1} parent=1 // pred_fallthru
      _
    %1914 = vsyncpa [#allocation3], 1
    %1915 = vsyncpa [#allocation4], 1
    %1916 = vsyncpa [#allocation7], 1

</llo_original>
